<compile_context>
chip_gen: v7x
topology: tpu7x:2x2x1
jax: 0.10.0
libtpu: 0.0.40
codegen_flags: <defaults>
</compile_context>

<pallas_src>
import jax
import jax.numpy as jnp
import numpy as np
from jax.experimental import pallas as pl
from jax.experimental.pallas import tpu as pltpu

HID = 64            # hidden width of every embedding branch
N_HEADS = 3
HEAD_DIM = 64       # single_head_dim = (64+64+64)/3
OUT_PAD = 128       # lane-dense padded width of the final layer
F32 = jnp.float32


def _round_up(x, m):
    return ((x + m - 1) // m) * m


# --------------------------------------------------------------------------- #
# Kernel
# --------------------------------------------------------------------------- #
def actor_kernel(s01_ref, s2_ref,
                 w_in_ref, b_in_ref,
                 w_sd1_ref, b_sd1_ref, w_sd2_ref, b_sd2_ref,
                 w_q_ref, w_kv_ref,
                 w_ma_a_ref, w_ma_b_ref, b_ma_ref,
                 w_a1_ref, b_a1_ref, w_a2_ref, b_a2_ref,
                 out_ref):
    cd = w_in_ref.dtype                       # compute dtype (f32 or bf16)
    TB = s01_ref.shape[0]                     # batch tile
    N = s2_ref.shape[0] // TB                 # surrounding drones per batch row

    # own_fc | own_grid : fused block-diagonal Linear + ReLU -> (TB, 128)
    s01 = s01_ref[...].astype(cd)
    oe_ee = jnp.maximum(
        jnp.dot(s01, w_in_ref[...], preferred_element_type=F32) + b_in_ref[...], 0.0)

    # surr_drone : Linear+ReLU+Linear+ReLU on flattened (TB*N, D2)
    s2f = s2_ref[...].astype(cd)
    h = jnp.maximum(
        jnp.dot(s2f, w_sd1_ref[...], preferred_element_type=F32) + b_sd1_ref[...], 0.0)
    intru = jnp.maximum(
        jnp.dot(h.astype(cd), w_sd2_ref[...], preferred_element_type=F32)
        + b_sd2_ref[...], 0.0)                                        # (TB*N, 64)

    # single-head attention over surrounding drones.
    #   w_q_ref is (128,128): rows 64: are zero (env_e ignored), cols 64: are
    #   zero (q padded to the kv lane layout) and the 1/sqrt(64) scale is folded.
    q_pad = jnp.dot(oe_ee.astype(cd), w_q_ref[...],
                    preferred_element_type=F32)                       # (TB, 128)
    kv = jnp.dot(intru.astype(cd), w_kv_ref[...],
                 preferred_element_type=F32)                          # (TB*N, 128)
    kv3 = kv.reshape(TB, N, 2 * HID)                                  # [k | v] lanes

    score = jnp.sum(kv3 * q_pad[:, None, :], axis=-1)                 # (TB, N)
    m = jnp.max(score, axis=-1, keepdims=True)
    e = jnp.exp(score - m)
    inv = pl.reciprocal(jnp.sum(e, axis=-1, keepdims=True), approx=True)
    alpha = e * inv                                                   # (TB, N)
    wsum = jnp.sum(kv3 * alpha[:, :, None], axis=1)                   # (TB, 128)
    # lanes 64: of wsum hold v_att; lanes :64 are killed by the zero block in
    # w_ma_b, so no lane slicing / concat is needed anywhere.

    # Multi-head block (seq_length == 1 => softmax == 1 and attn_i == head_i@w_cv,
    # pre-folded into multi_att_out on the host, split into two 128x128 blocks).
    multi = (jnp.dot(oe_ee.astype(cd), w_ma_a_ref[...], preferred_element_type=F32)
             + jnp.dot(wsum.astype(cd), w_ma_b_ref[...], preferred_element_type=F32)
             + b_ma_ref[...])                                          # (TB, 128)

    # action_out : Linear + ReLU + Linear + Tanh  (final layer lane-padded to 128)
    a1 = jnp.maximum(
        jnp.dot(multi.astype(cd), w_a1_ref[...], preferred_element_type=F32)
        + b_a1_ref[...], 0.0)
    out = jnp.tanh(
        jnp.dot(a1.astype(cd), w_a2_ref[...], preferred_element_type=F32)
        + b_a2_ref[...])
    out_ref[...] = out.astype(out_ref.dtype)                          # (TB, 128)


# --------------------------------------------------------------------------- #
# Host-side parameter preparation (fusion / folding / padding), done once.
# --------------------------------------------------------------------------- #
def prepare_params(p, n_actions, compute_dtype=jnp.float32):
    d0 = p["w_own"].shape[0]
    d1 = p["w_grid"].shape[0]

    # Block-diagonal fusion of own_fc and own_grid.
    w_in = jnp.zeros((d0 + d1, 2 * HID), F32)
    w_in = w_in.at[:d0, :HID].set(p["w_own"]).at[d0:, HID:].set(p["w_grid"])
    b_in = jnp.concatenate([p["b_own"], p["b_grid"]], axis=1)

    # q projection: reads fused [own_e|env_e], writes into the kv lane layout,
    # with the 1/sqrt(64) softmax scale folded in.
    w_q = jnp.zeros((2 * HID, 2 * HID), F32)
    w_q = w_q.at[:HID, :HID].set(p["w_q"] * (1.0 / np.sqrt(HID)))

    # Fuse k / v projections.
    w_kv = jnp.concatenate([p["w_k"], p["w_v"]], axis=1)              # (64, 128)

    # Fold com_v into multi_att_out (softmax over a size-1 axis == 1 exactly),
    # then split into [own_e|env_e] and [.|v_att] halves so the kernel never
    # concatenates or slices lanes.
    w_ma_eff = jnp.concatenate(
        [p["w_cv"] @ p["w_ma"][i * HEAD_DIM:(i + 1) * HEAD_DIM]
         for i in range(N_HEADS)], axis=0)                            # (192, 128)
    w_ma_a = w_ma_eff[:2 * HID]                                       # (128, 128)
    w_ma_b = jnp.zeros((2 * HID, 128), F32).at[HID:].set(w_ma_eff[2 * HID:])

    # Pad final layer to a lane-dense 128-wide output.
    w_a2p = jnp.zeros((HID, OUT_PAD), F32).at[:, :n_actions].set(p["w_a2"])
    b_a2p = jnp.zeros((1, OUT_PAD), F32).at[:, :n_actions].set(p["b_a2"])

    cd = compute_dtype
    return dict(
        w_in=w_in.astype(cd), b_in=b_in,
        w_sd1=p["w_sd1"].astype(cd), b_sd1=p["b_sd1"],
        w_sd2=p["w_sd2"].astype(cd), b_sd2=p["b_sd2"],
        w_q=w_q.astype(cd), w_kv=w_kv.astype(cd),
        w_ma_a=w_ma_a.astype(cd), w_ma_b=w_ma_b.astype(cd), b_ma=p["b_ma"],
        w_a1=p["w_a1"].astype(cd), b_a1=p["b_a1"],
        w_a2=w_a2p.astype(cd), b_a2=b_a2p,
    )


_WEIGHT_KEYS = ["w_in", "b_in", "w_sd1", "b_sd1", "w_sd2", "b_sd2",
                "w_q", "w_kv", "w_ma_a", "w_ma_b", "b_ma",
                "w_a1", "b_a1", "w_a2", "b_a2"]


# --------------------------------------------------------------------------- #
# Wrapper
# --------------------------------------------------------------------------- #
def actor_forward(prepared, s0, s1, s2, *, n_actions, block_b=256):
    B = s0.shape[0]
    N = s2.shape[1]
    d2 = s2.shape[2]
    cd = prepared["w_in"].dtype

    # Batch tile: <= block_b rows, multiple of 8 (sublane), batch zero-padded.
    TB = min(_round_up(max(block_b, 8), 8), _round_up(max(B, 1), 8))
    B_pad = _round_up(B, TB)

    s01 = jnp.concatenate([s0, s1], axis=1).astype(cd)                # (B, d0+d1)
    if B_pad != B:
        s01 = jnp.pad(s01, ((0, B_pad - B), (0, 0)))
        s2 = jnp.pad(s2, ((0, B_pad - B), (0, 0), (0, 0)))
    s2f = s2.reshape(B_pad * N, d2).astype(cd)                        # (B_pad*N, d2)
    d01 = s01.shape[1]

    weights = [prepared[k] for k in _WEIGHT_KEYS]

    def const_spec(arr):
        # Full-array resident block; same block index every grid step -> the
        # pipeline fetches the weight once and keeps it in VMEM.
        return pl.BlockSpec(arr.shape, lambda i: (0,) * arr.ndim)

    in_specs = [
        pl.BlockSpec((TB, d01), lambda i: (i, 0)),
        pl.BlockSpec((TB * N, d2), lambda i: (i, 0)),
    ] + [const_spec(w) for w in weights]

    out = pl.pallas_call(
        actor_kernel,
        out_shape=jax.ShapeDtypeStruct((B_pad, OUT_PAD), jnp.float32),
        grid=(B_pad // TB,),
        in_specs=in_specs,
        out_specs=pl.BlockSpec((TB, OUT_PAD), lambda i: (i, 0)),
        compiler_params=pltpu.CompilerParams(
            dimension_semantics=("parallel",),
            vmem_limit_bytes=32 * 1024 * 1024),
    )(s01, s2f, *weights)

    # PyTorch returns (B, seq_length=1, n_actions)
    return out[:B, :n_actions].reshape(B, 1, n_actions)


# --------------------------------------------------------------------------- #
# Init + pure-JAX reference (literal transcription of the PyTorch forward)
# --------------------------------------------------------------------------- #
def init_params(key, actor_obs, n_actions):
    d0, d1, d2 = actor_obs

    def linear(k, fan_in, fan_out, bias=True):
        kw, kb = jax.random.split(k)
        bound = 1.0 / np.sqrt(fan_in)
        w = jax.random.uniform(kw, (fan_in, fan_out), F32, -bound, bound)
        if not bias:
            return w
        b = jax.random.uniform(kb, (1, fan_out), F32, -bound, bound)
        return w, b

    ks = jax.random.split(key, 13)
    p = {}
    p["w_own"], p["b_own"] = linear(ks[0], d0, HID)
    p["w_grid"], p["b_grid"] = linear(ks[1], d1, HID)
    p["w_sd1"], p["b_sd1"] = linear(ks[2], d2, HID)
    p["w_sd2"], p["b_sd2"] = linear(ks[3], HID, HID)
    p["w_q"] = linear(ks[4], HID, HID, bias=False)
    p["w_k"] = linear(ks[5], HID, HID, bias=False)
    p["w_v"] = linear(ks[6], HID, HID, bias=False)
    p["w_cq"] = linear(ks[7], HEAD_DIM, HEAD_DIM, bias=False)
    p["w_ck"] = linear(ks[8], HEAD_DIM, HEAD_DIM, bias=False)
    p["w_cv"] = linear(ks[9], HEAD_DIM, HEAD_DIM, bias=False)
    p["w_ma"], p["b_ma"] = linear(ks[10], N_HEADS * HEAD_DIM, 128)
    p["w_a1"], p["b_a1"] = linear(ks[11], 128, 64)
    p["w_a2"], p["b_a2"] = linear(ks[12], 64, n_actions)
    return p


def actor_forward_ref(params, s0, s1, s2):
    relu = jax.nn.relu
    own_e = relu(s0 @ params["w_own"] + params["b_own"])
    env_e = relu(s1 @ params["w_grid"] + params["b_grid"])
    h = relu(jnp.einsum("bnd,de->bne", s2, params["w_sd1"]) + params["b_sd1"])
    intru_e = relu(jnp.einsum("bne,ef->bnf", h, params["w_sd2"]) + params["b_sd2"])
    q = own_e @ params["w_q"]
    k = jnp.einsum("bne,ef->bnf", intru_e, params["w_k"])
    v = jnp.einsum("bne,ef->bnf", intru_e, params["w_v"])
    score = jnp.einsum("bne,be->bn", k, q)[..., None]            # (B, N, 1)
    alpha = jax.nn.softmax(score / np.sqrt(HID), axis=1)
    v_att = jnp.sum(v * alpha, axis=1)                           # (B, 64)
    concat = jnp.concatenate([own_e, env_e, v_att], axis=1)      # (B, 192)
    B = concat.shape[0]
    raw = concat.reshape(B, 1, N_HEADS, HEAD_DIM)
    comQ = raw @ params["w_cq"]
    comK = raw @ params["w_ck"]
    comV = raw @ params["w_cv"]
    comQ = comQ.transpose(0, 2, 1, 3)
    comK = comK.transpose(0, 2, 1, 3)
    comV = comV.transpose(0, 2, 1, 3)
    product = comQ @ comK.transpose(0, 1, 3, 2) / np.sqrt(HEAD_DIM)
    scores = jax.nn.softmax(product, axis=-1) @ comV
    cm = scores.transpose(0, 2, 1, 3).reshape(B, 1, N_HEADS * HEAD_DIM)
    ma = cm @ params["w_ma"] + params["b_ma"]
    a1 = relu(ma @ params["w_a1"] + params["b_a1"])
    return jnp.tanh(a1 @ params["w_a2"] + params["b_a2"])        # (B, 1, n_actions)


if __name__ == "__main__":
    actor_obs = (8, 8, 6)   # (own obs dim, grid obs dim, surrounding-drone obs dim)
    N_INTRU = 8             # number of surrounding drones
    N_ACTIONS = 2

    key = jax.random.PRNGKey(0)
    kp, k0, k1, k2 = jax.random.split(key, 4)
    params = init_params(kp, actor_obs, N_ACTIONS)
    prep32 = prepare_params(params, N_ACTIONS, jnp.float32)
    prep16 = prepare_params(params, N_ACTIONS, jnp.bfloat16)

    # ---- small batch (pads 2 -> 8), f32 and bf16 paths ----
    B = 2
    s0 = jax.random.normal(k0, (B, actor_obs[0]), F32)
    s1 = jax.random.normal(k1, (B, actor_obs[1]), F32)
    s2 = jax.random.normal(k2, (B, N_INTRU, actor_obs[2]), F32)

    ref = jax.block_until_ready(actor_forward_ref(params, s0, s1, s2))

    out32 = jax.block_until_ready(
        actor_forward(prep32, s0, s1, s2, n_actions=N_ACTIONS))
    assert out32.shape == (B, 1, N_ACTIONS), out32.shape
    np.testing.assert_allclose(np.asarray(out32), np.asarray(ref),
                               rtol=1e-2, atol=1e-2)

    out16 = jax.block_until_ready(
        actor_forward(prep16, s0, s1, s2, n_actions=N_ACTIONS))
    assert out16.shape == (B, 1, N_ACTIONS), out16.shape
    np.testing.assert_allclose(np.asarray(out16), np.asarray(ref),
                               rtol=1e-1, atol=1e-1)

    # ---- multi-tile grid path (B=20, block_b=8 -> grid of 3, pads to 24) ----
    Bm = 20
    km0, km1, km2 = jax.random.split(jax.random.PRNGKey(1), 3)
    m0 = jax.random.normal(km0, (Bm, actor_obs[0]), F32)
    m1 = jax.random.normal(km1, (Bm, actor_obs[1]), F32)
    m2 = jax.random.normal(km2, (Bm, N_INTRU, actor_obs[2]), F32)
    refm = jax.block_until_ready(actor_forward_ref(params, m0, m1, m2))
    outm = jax.block_until_ready(
        actor_forward(prep32, m0, m1, m2, n_actions=N_ACTIONS, block_b=8))
    assert outm.shape == (Bm, 1, N_ACTIONS), outm.shape
    np.testing.assert_allclose(np.asarray(outm), np.asarray(refm),
                               rtol=1e-2, atol=1e-2)

    print("KERNEL_OK")
</pallas_src>

<mosaic_0001>
module attributes {stable_mosaic.version = 11 : i64} {
  func.func @actor_kernel(%arg0: i32, %arg1: memref<8x16xf32, #tpu.memory_space<vmem>>, %arg2: memref<64x6xf32, #tpu.memory_space<vmem>>, %arg3: memref<16x128xf32, #tpu.memory_space<vmem>>, %arg4: memref<1x128xf32, #tpu.memory_space<vmem>>, %arg5: memref<6x64xf32, #tpu.memory_space<vmem>>, %arg6: memref<1x64xf32, #tpu.memory_space<vmem>>, %arg7: memref<64x64xf32, #tpu.memory_space<vmem>>, %arg8: memref<1x64xf32, #tpu.memory_space<vmem>>, %arg9: memref<128x128xf32, #tpu.memory_space<vmem>>, %arg10: memref<64x128xf32, #tpu.memory_space<vmem>>, %arg11: memref<128x128xf32, #tpu.memory_space<vmem>>, %arg12: memref<128x128xf32, #tpu.memory_space<vmem>>, %arg13: memref<1x128xf32, #tpu.memory_space<vmem>>, %arg14: memref<128x64xf32, #tpu.memory_space<vmem>>, %arg15: memref<1x64xf32, #tpu.memory_space<vmem>>, %arg16: memref<64x128xf32, #tpu.memory_space<vmem>>, %arg17: memref<1x128xf32, #tpu.memory_space<vmem>>, %arg18: memref<8x128xf32, #tpu.memory_space<vmem>>) attributes {dimension_semantics = [#tpu.dimension_semantics<parallel>], iteration_bounds = array<i64: 1>, scalar_prefetch = 0 : i64, scratch_operands = 0 : i64, tpu.core_type = #tpu.core_type<tc>, window_params = [{transform_indices = @transform_0, window_bounds = array<i64: 8, 16>}, {transform_indices = @transform_1, window_bounds = array<i64: 64, 6>}, {pipeline_mode = #tpu.pipeline_mode<synchronous>, transform_indices = @transform_2, window_bounds = array<i64: 16, 128>}, {pipeline_mode = #tpu.pipeline_mode<synchronous>, transform_indices = @transform_3, window_bounds = array<i64: 1, 128>}, {pipeline_mode = #tpu.pipeline_mode<synchronous>, transform_indices = @transform_4, window_bounds = array<i64: 6, 64>}, {pipeline_mode = #tpu.pipeline_mode<synchronous>, transform_indices = @transform_5, window_bounds = array<i64: 1, 64>}, {pipeline_mode = #tpu.pipeline_mode<synchronous>, transform_indices = @transform_6, window_bounds = array<i64: 64, 64>}, {pipeline_mode = #tpu.pipeline_mode<synchronous>, transform_indices = @transform_7, window_bounds = array<i64: 1, 64>}, {pipeline_mode = #tpu.pipeline_mode<synchronous>, transform_indices = @transform_8, window_bounds = array<i64: 128, 128>}, {pipeline_mode = #tpu.pipeline_mode<synchronous>, transform_indices = @transform_9, window_bounds = array<i64: 64, 128>}, {pipeline_mode = #tpu.pipeline_mode<synchronous>, transform_indices = @transform_10, window_bounds = array<i64: 128, 128>}, {pipeline_mode = #tpu.pipeline_mode<synchronous>, transform_indices = @transform_11, window_bounds = array<i64: 128, 128>}, {pipeline_mode = #tpu.pipeline_mode<synchronous>, transform_indices = @transform_12, window_bounds = array<i64: 1, 128>}, {pipeline_mode = #tpu.pipeline_mode<synchronous>, transform_indices = @transform_13, window_bounds = array<i64: 128, 64>}, {pipeline_mode = #tpu.pipeline_mode<synchronous>, transform_indices = @transform_14, window_bounds = array<i64: 1, 64>}, {pipeline_mode = #tpu.pipeline_mode<synchronous>, transform_indices = @transform_15, window_bounds = array<i64: 64, 128>}, {pipeline_mode = #tpu.pipeline_mode<synchronous>, transform_indices = @transform_16, window_bounds = array<i64: 1, 128>}, {transform_indices = @transform_17, window_bounds = array<i64: 8, 128>}]} {
    %c0 = arith.constant 0 : index
    %c0_0 = arith.constant 0 : index
    %0 = vector.load %arg1[%c0, %c0_0] : memref<8x16xf32, #tpu.memory_space<vmem>>, vector<8x16xf32>
    %c0_1 = arith.constant 0 : index
    %c0_2 = arith.constant 0 : index
    %1 = vector.load %arg3[%c0_1, %c0_2] : memref<16x128xf32, #tpu.memory_space<vmem>>, vector<16x128xf32>
    %cst = arith.constant dense<0.000000e+00> : vector<8x128xf32>
    %2 = tpu.matmul %0, %1, %cst {dimension_numbers = #tpu.dot_dimension_numbers<[1], [0], [0], [1], [0, 0, 1, 1], [], []>} : vector<8x16xf32>, vector<16x128xf32>, vector<8x128xf32> -> vector<8x128xf32>
    %c0_3 = arith.constant 0 : index
    %c0_4 = arith.constant 0 : index
    %3 = vector.load %arg4[%c0_3, %c0_4] : memref<1x128xf32, #tpu.memory_space<vmem>>, vector<1x128xf32>
    %4 = vector.broadcast %3 : vector<1x128xf32> to vector<8x128xf32>
    %5 = arith.addf %2, %4 : vector<8x128xf32>
    %cst_5 = arith.constant 0.000000e+00 : f32
    %6 = vector.broadcast %cst_5 : f32 to vector<8x128xf32>
    %7 = arith.maximumf %5, %6 : vector<8x128xf32>
    %c0_6 = arith.constant 0 : index
    %c0_7 = arith.constant 0 : index
    %8 = vector.load %arg2[%c0_6, %c0_7] : memref<64x6xf32, #tpu.memory_space<vmem>>, vector<64x6xf32>
    %c0_8 = arith.constant 0 : index
    %c0_9 = arith.constant 0 : index
    %9 = vector.load %arg5[%c0_8, %c0_9] : memref<6x64xf32, #tpu.memory_space<vmem>>, vector<6x64xf32>
    %cst_10 = arith.constant dense<0.000000e+00> : vector<64x64xf32>
    %10 = tpu.matmul %8, %9, %cst_10 {dimension_numbers = #tpu.dot_dimension_numbers<[1], [0], [0], [1], [0, 0, 1, 1], [], []>} : vector<64x6xf32>, vector<6x64xf32>, vector<64x64xf32> -> vector<64x64xf32>
    %c0_11 = arith.constant 0 : index
    %c0_12 = arith.constant 0 : index
    %11 = vector.load %arg6[%c0_11, %c0_12] : memref<1x64xf32, #tpu.memory_space<vmem>>, vector<1x64xf32>
    %12 = vector.broadcast %11 : vector<1x64xf32> to vector<64x64xf32>
    %13 = arith.addf %10, %12 : vector<64x64xf32>
    %cst_13 = arith.constant 0.000000e+00 : f32
    %14 = vector.broadcast %cst_13 : f32 to vector<64x64xf32>
    %15 = arith.maximumf %13, %14 : vector<64x64xf32>
    %c0_14 = arith.constant 0 : index
    %c0_15 = arith.constant 0 : index
    %16 = vector.load %arg7[%c0_14, %c0_15] : memref<64x64xf32, #tpu.memory_space<vmem>>, vector<64x64xf32>
    %cst_16 = arith.constant dense<0.000000e+00> : vector<64x64xf32>
    %17 = tpu.matmul %15, %16, %cst_16 {dimension_numbers = #tpu.dot_dimension_numbers<[1], [0], [0], [1], [0, 0, 1, 1], [], []>} : vector<64x64xf32>, vector<64x64xf32>, vector<64x64xf32> -> vector<64x64xf32>
    %c0_17 = arith.constant 0 : index
    %c0_18 = arith.constant 0 : index
    %18 = vector.load %arg8[%c0_17, %c0_18] : memref<1x64xf32, #tpu.memory_space<vmem>>, vector<1x64xf32>
    %19 = vector.broadcast %18 : vector<1x64xf32> to vector<64x64xf32>
    %20 = arith.addf %17, %19 : vector<64x64xf32>
    %cst_19 = arith.constant 0.000000e+00 : f32
    %21 = vector.broadcast %cst_19 : f32 to vector<64x64xf32>
    %22 = arith.maximumf %20, %21 : vector<64x64xf32>
    %c0_20 = arith.constant 0 : index
    %c0_21 = arith.constant 0 : index
    %23 = vector.load %arg9[%c0_20, %c0_21] : memref<128x128xf32, #tpu.memory_space<vmem>>, vector<128x128xf32>
    %cst_22 = arith.constant dense<0.000000e+00> : vector<8x128xf32>
    %24 = tpu.matmul %7, %23, %cst_22 {dimension_numbers = #tpu.dot_dimension_numbers<[1], [0], [0], [1], [0, 0, 1, 1], [], []>} : vector<8x128xf32>, vector<128x128xf32>, vector<8x128xf32> -> vector<8x128xf32>
    %c0_23 = arith.constant 0 : index
    %c0_24 = arith.constant 0 : index
    %25 = vector.load %arg10[%c0_23, %c0_24] : memref<64x128xf32, #tpu.memory_space<vmem>>, vector<64x128xf32>
    %cst_25 = arith.constant dense<0.000000e+00> : vector<64x128xf32>
    %26 = tpu.matmul %22, %25, %cst_25 {dimension_numbers = #tpu.dot_dimension_numbers<[1], [0], [0], [1], [0, 0, 1, 1], [], []>} : vector<64x64xf32>, vector<64x128xf32>, vector<64x128xf32> -> vector<64x128xf32>
    %27 = vector.shape_cast %26 : vector<64x128xf32> to vector<8x8x128xf32>
    %28 = vector.shape_cast %24 : vector<8x128xf32> to vector<8x1x128xf32>
    %29 = vector.broadcast %28 : vector<8x1x128xf32> to vector<8x8x128xf32>
    %30 = arith.mulf %27, %29 : vector<8x8x128xf32>
    %cst_26 = arith.constant dense<0.000000e+00> : vector<8x8xf32>
    %31 = vector.multi_reduction <add>, %30, %cst_26 [2] : vector<8x8x128xf32> to vector<8x8xf32>
    %cst_27 = arith.constant dense<0xFF800000> : vector<8xf32>
    %32 = vector.multi_reduction <maximumf>, %31, %cst_27 [1] : vector<8x8xf32> to vector<8xf32>
    %33 = vector.shape_cast %32 : vector<8xf32> to vector<8x1xf32>
    %34 = vector.broadcast %33 : vector<8x1xf32> to vector<8x8xf32>
    %35 = arith.subf %31, %34 : vector<8x8xf32>
    %36 = math.exp %35 : vector<8x8xf32>
    %cst_28 = arith.constant dense<0.000000e+00> : vector<8xf32>
    %37 = vector.multi_reduction <add>, %36, %cst_28 [1] : vector<8x8xf32> to vector<8xf32>
    %38 = vector.shape_cast %37 : vector<8xf32> to vector<8x1xf32>
    %39 = tpu.reciprocal %38 {approx = true} : vector<8x1xf32> -> vector<8x1xf32>
    %40 = vector.broadcast %39 : vector<8x1xf32> to vector<8x8xf32>
    %41 = arith.mulf %36, %40 : vector<8x8xf32>
    %42 = vector.shape_cast %41 : vector<8x8xf32> to vector<8x8x1xf32>
    %43 = vector.broadcast %42 : vector<8x8x1xf32> to vector<8x8x128xf32>
    %44 = arith.mulf %27, %43 : vector<8x8x128xf32>
    %cst_29 = arith.constant dense<0.000000e+00> : vector<8x128xf32>
    %45 = vector.multi_reduction <add>, %44, %cst_29 [1] : vector<8x8x128xf32> to vector<8x128xf32>
    %c0_30 = arith.constant 0 : index
    %c0_31 = arith.constant 0 : index
    %46 = vector.load %arg11[%c0_30, %c0_31] : memref<128x128xf32, #tpu.memory_space<vmem>>, vector<128x128xf32>
    %cst_32 = arith.constant dense<0.000000e+00> : vector<8x128xf32>
    %47 = tpu.matmul %7, %46, %cst_32 {dimension_numbers = #tpu.dot_dimension_numbers<[1], [0], [0], [1], [0, 0, 1, 1], [], []>} : vector<8x128xf32>, vector<128x128xf32>, vector<8x128xf32> -> vector<8x128xf32>
    %c0_33 = arith.constant 0 : index
    %c0_34 = arith.constant 0 : index
    %48 = vector.load %arg12[%c0_33, %c0_34] : memref<128x128xf32, #tpu.memory_space<vmem>>, vector<128x128xf32>
    %cst_35 = arith.constant dense<0.000000e+00> : vector<8x128xf32>
    %49 = tpu.matmul %45, %48, %cst_35 {dimension_numbers = #tpu.dot_dimension_numbers<[1], [0], [0], [1], [0, 0, 1, 1], [], []>} : vector<8x128xf32>, vector<128x128xf32>, vector<8x128xf32> -> vector<8x128xf32>
    %50 = arith.addf %47, %49 : vector<8x128xf32>
    %c0_36 = arith.constant 0 : index
    %c0_37 = arith.constant 0 : index
    %51 = vector.load %arg13[%c0_36, %c0_37] : memref<1x128xf32, #tpu.memory_space<vmem>>, vector<1x128xf32>
    %52 = vector.broadcast %51 : vector<1x128xf32> to vector<8x128xf32>
    %53 = arith.addf %50, %52 : vector<8x128xf32>
    %c0_38 = arith.constant 0 : index
    %c0_39 = arith.constant 0 : index
    %54 = vector.load %arg14[%c0_38, %c0_39] : memref<128x64xf32, #tpu.memory_space<vmem>>, vector<128x64xf32>
    %cst_40 = arith.constant dense<0.000000e+00> : vector<8x64xf32>
    %55 = tpu.matmul %53, %54, %cst_40 {dimension_numbers = #tpu.dot_dimension_numbers<[1], [0], [0], [1], [0, 0, 1, 1], [], []>} : vector<8x128xf32>, vector<128x64xf32>, vector<8x64xf32> -> vector<8x64xf32>
    %c0_41 = arith.constant 0 : index
    %c0_42 = arith.constant 0 : index
    %56 = vector.load %arg15[%c0_41, %c0_42] : memref<1x64xf32, #tpu.memory_space<vmem>>, vector<1x64xf32>
    %57 = vector.broadcast %56 : vector<1x64xf32> to vector<8x64xf32>
    %58 = arith.addf %55, %57 : vector<8x64xf32>
    %cst_43 = arith.constant 0.000000e+00 : f32
    %59 = vector.broadcast %cst_43 : f32 to vector<8x64xf32>
    %60 = arith.maximumf %58, %59 : vector<8x64xf32>
    %c0_44 = arith.constant 0 : index
    %c0_45 = arith.constant 0 : index
    %61 = vector.load %arg16[%c0_44, %c0_45] : memref<64x128xf32, #tpu.memory_space<vmem>>, vector<64x128xf32>
    %cst_46 = arith.constant dense<0.000000e+00> : vector<8x128xf32>
    %62 = tpu.matmul %60, %61, %cst_46 {dimension_numbers = #tpu.dot_dimension_numbers<[1], [0], [0], [1], [0, 0, 1, 1], [], []>} : vector<8x64xf32>, vector<64x128xf32>, vector<8x128xf32> -> vector<8x128xf32>
    %c0_47 = arith.constant 0 : index
    %c0_48 = arith.constant 0 : index
    %63 = vector.load %arg17[%c0_47, %c0_48] : memref<1x128xf32, #tpu.memory_space<vmem>>, vector<1x128xf32>
    %64 = vector.broadcast %63 : vector<1x128xf32> to vector<8x128xf32>
    %65 = arith.addf %62, %64 : vector<8x128xf32>
    %66 = math.tanh %65 : vector<8x128xf32>
    %c0_49 = arith.constant 0 : index
    %c0_50 = arith.constant 0 : index
    %67 = vector.load %arg18[%c0_49, %c0_50] : memref<8x128xf32, #tpu.memory_space<vmem>>, vector<8x128xf32>
    tpu.vector_store %arg18[%c0_49, %c0_50], %66 {strides = array<i32>} : memref<8x128xf32, #tpu.memory_space<vmem>>, vector<8x128xf32>,
    return
  }
  func.func @transform_0(%arg0: i32) -> (i32, i32) {
    %c0_i32 = arith.constant 0 : i32
    %c0_i32_0 = arith.constant 0 : i32
    return %arg0, %c0_i32 : i32, i32
  }
  func.func @transform_1(%arg0: i32) -> (i32, i32) {
    %c0_i32 = arith.constant 0 : i32
    %c0_i32_0 = arith.constant 0 : i32
    return %arg0, %c0_i32 : i32, i32
  }
  func.func @transform_2(%arg0: i32) -> (i32, i32) {
    %c0_i32 = arith.constant 0 : i32
    %c0_i32_0 = arith.constant 0 : i32
    %c0_i32_1 = arith.constant 0 : i32
    return %c0_i32, %c0_i32_0 : i32, i32
  }
  func.func @transform_3(%arg0: i32) -> (i32, i32) {
    %c0_i32 = arith.constant 0 : i32
    %c0_i32_0 = arith.constant 0 : i32
    %c0_i32_1 = arith.constant 0 : i32
    return %c0_i32, %c0_i32_0 : i32, i32
  }
  func.func @transform_4(%arg0: i32) -> (i32, i32) {
    %c0_i32 = arith.constant 0 : i32
    %c0_i32_0 = arith.constant 0 : i32
    %c0_i32_1 = arith.constant 0 : i32
    return %c0_i32, %c0_i32_0 : i32, i32
  }
  func.func @transform_5(%arg0: i32) -> (i32, i32) {
    %c0_i32 = arith.constant 0 : i32
    %c0_i32_0 = arith.constant 0 : i32
    %c0_i32_1 = arith.constant 0 : i32
    return %c0_i32, %c0_i32_0 : i32, i32
  }
  func.func @transform_6(%arg0: i32) -> (i32, i32) {
    %c0_i32 = arith.constant 0 : i32
    %c0_i32_0 = arith.constant 0 : i32
    %c0_i32_1 = arith.constant 0 : i32
    return %c0_i32, %c0_i32_0 : i32, i32
  }
  func.func @transform_7(%arg0: i32) -> (i32, i32) {
    %c0_i32 = arith.constant 0 : i32
    %c0_i32_0 = arith.constant 0 : i32
    %c0_i32_1 = arith.constant 0 : i32
    return %c0_i32, %c0_i32_0 : i32, i32
  }
  func.func @transform_8(%arg0: i32) -> (i32, i32) {
    %c0_i32 = arith.constant 0 : i32
    %c0_i32_0 = arith.constant 0 : i32
    %c0_i32_1 = arith.constant 0 : i32
    return %c0_i32, %c0_i32_0 : i32, i32
  }
  func.func @transform_9(%arg0: i32) -> (i32, i32) {
    %c0_i32 = arith.constant 0 : i32
    %c0_i32_0 = arith.constant 0 : i32
    %c0_i32_1 = arith.constant 0 : i32
    return %c0_i32, %c0_i32_0 : i32, i32
  }
  func.func @transform_10(%arg0: i32) -> (i32, i32) {
    %c0_i32 = arith.constant 0 : i32
    %c0_i32_0 = arith.constant 0 : i32
    %c0_i32_1 = arith.constant 0 : i32
    return %c0_i32, %c0_i32_0 : i32, i32
  }
  func.func @transform_11(%arg0: i32) -> (i32, i32) {
    %c0_i32 = arith.constant 0 : i32
    %c0_i32_0 = arith.constant 0 : i32
    %c0_i32_1 = arith.constant 0 : i32
    return %c0_i32, %c0_i32_0 : i32, i32
  }
  func.func @transform_12(%arg0: i32) -> (i32, i32) {
    %c0_i32 = arith.constant 0 : i32
    %c0_i32_0 = arith.constant 0 : i32
    %c0_i32_1 = arith.constant 0 : i32
    return %c0_i32, %c0_i32_0 : i32, i32
  }
  func.func @transform_13(%arg0: i32) -> (i32, i32) {
    %c0_i32 = arith.constant 0 : i32
    %c0_i32_0 = arith.constant 0 : i32
    %c0_i32_1 = arith.constant 0 : i32
    return %c0_i32, %c0_i32_0 : i32, i32
  }
  func.func @transform_14(%arg0: i32) -> (i32, i32) {
    %c0_i32 = arith.constant 0 : i32
    %c0_i32_0 = arith.constant 0 : i32
    %c0_i32_1 = arith.constant 0 : i32
    return %c0_i32, %c0_i32_0 : i32, i32
  }
  func.func @transform_15(%arg0: i32) -> (i32, i32) {
    %c0_i32 = arith.constant 0 : i32
    %c0_i32_0 = arith.constant 0 : i32
    %c0_i32_1 = arith.constant 0 : i32
    return %c0_i32, %c0_i32_0 : i32, i32
  }
  func.func @transform_16(%arg0: i32) -> (i32, i32) {
    %c0_i32 = arith.constant 0 : i32
    %c0_i32_0 = arith.constant 0 : i32
    %c0_i32_1 = arith.constant 0 : i32
    return %c0_i32, %c0_i32_0 : i32, i32
  }
  func.func @transform_17(%arg0: i32) -> (i32, i32) {
    %c0_i32 = arith.constant 0 : i32
    %c0_i32_0 = arith.constant 0 : i32
    return %arg0, %c0_i32 : i32, i32
  }
}

</mosaic_0001>

<llo_original>
// kernel: tpu_custom_call.1
$region0: #{tpu_custom_call.1}
  #allocation0 [shape = 'u32[]', space=smem, size = 0x4, offset = 0x4, fixed_abs, tag = 'smem constant byte address 0x4 - core index']
  #allocation1 [shape = 'u32[144,128]{1,0:T(1,128)}', space=vmem, size = 0x12000, scoped, tag = 'internal scratch']
  %s0 = inlined_call_operand.hbm [shape: f32[8,16], index: 0, kind: input, shape index: {}]
  %s1 = inlined_call_operand.vmem [shape: f32[64,6], index: 1, kind: input, shape index: {}]
  %s2 = inlined_call_operand.hbm [shape: f32[16,128], index: 2, kind: input, shape index: {}]
  %s3 = inlined_call_operand.hbm [shape: f32[1,128], index: 3, kind: input, shape index: {}]
  %s4 = inlined_call_operand.hbm [shape: f32[6,64], index: 4, kind: input, shape index: {}]
  %s5 = inlined_call_operand.hbm [shape: f32[1,64], index: 5, kind: input, shape index: {}]
  %s6 = inlined_call_operand.hbm [shape: f32[64,64], index: 6, kind: input, shape index: {}]
  %s7 = inlined_call_operand.hbm [shape: f32[1,64], index: 7, kind: input, shape index: {}]
  %s8 = inlined_call_operand.vmem [shape: f32[128,128], index: 8, kind: input, shape index: {}]
  %s9 = inlined_call_operand.hbm [shape: f32[64,128], index: 9, kind: input, shape index: {}]
  %s10 = inlined_call_operand.vmem [shape: f32[128,128], index: 10, kind: input, shape index: {}]
  %s11 = inlined_call_operand.hbm [shape: f32[128,128], index: 11, kind: input, shape index: {}]
  %s12 = inlined_call_operand.hbm [shape: f32[1,128], index: 12, kind: input, shape index: {}]
  %s13 = inlined_call_operand.vmem [shape: f32[128,64], index: 13, kind: input, shape index: {}]
  %s14 = inlined_call_operand.hbm [shape: f32[1,64], index: 14, kind: input, shape index: {}]
  %s15 = inlined_call_operand.vmem [shape: f32[64,128], index: 15, kind: input, shape index: {}]
  %s16 = inlined_call_operand.vmem [shape: f32[1,128], index: 16, kind: input, shape index: {}]
  %s17 = inlined_call_operand.hbm [shape: f32[8,128], index: 17, kind: output, shape index: {}]
  %s18 = sld [smem:[#allocation0]]
  $region122: #{tpu_custom_call.1} parent=0
    _
  %s20 = ssub.s32 1, %s18
  %s21 = scalar_select 0, %s20, %s18
  $region1: #{tpu_custom_call.1} parent=0
    #allocation2 [shape = 'u8[4096]{0}', space=vmem, size = 0x1000, scoped, tag = 'input window, operand 0, single buffered']
    #allocation3 [shape = 's32[1]{0}', space=sflag, size = 0x4, scoped, tag = 'scoped memory for tpu_custom_call.1']
    #allocation4 [shape = 's32[1]{0}', space=sflag, size = 0x4, scoped, tag = 'scoped memory for tpu_custom_call.1']
    #allocation5 [shape = 'u8[8192]{0}', space=vmem, size = 0x2000, scoped, tag = 'input window, operand 2, single buffered']
    #allocation6 [shape = 's32[1]{0}', space=sflag, size = 0x4, scoped, tag = 'scoped memory for tpu_custom_call.1']
    #allocation7 [shape = 'u8[512]{0}', space=vmem, size = 0x400, scoped, tag = 'input window, operand 3, single buffered']
    #allocation8 [shape = 'u8[4096]{0}', space=vmem, size = 0x1000, scoped, tag = 'input window, operand 4, single buffered']
    #allocation9 [shape = 's32[1]{0}', space=sflag, size = 0x4, scoped, tag = 'scoped memory for tpu_custom_call.1']
    #allocation10 [shape = 'u8[512]{0}', space=vmem, size = 0x400, scoped, tag = 'input window, operand 5, single buffered']
    #allocation11 [shape = 'u8[32768]{0}', space=vmem, size = 0x8000, scoped, tag = 'input window, operand 6, single buffered']
    #allocation12 [shape = 's32[1]{0}', space=sflag, size = 0x4, scoped, tag = 'scoped memory for tpu_custom_call.1']
    #allocation13 [shape = 'u8[512]{0}', space=vmem, size = 0x400, scoped, tag = 'input window, operand 7, single buffered']
    #allocation14 [shape = 'u8[32768]{0}', space=vmem, size = 0x8000, scoped, tag = 'input window, operand 9, single buffered']
    #allocation15 [shape = 's32[1]{0}', space=sflag, size = 0x4, scoped, tag = 'scoped memory for tpu_custom_call.1']
    #allocation16 [shape = 'u8[65536]{0}', space=vmem, size = 0x10000, scoped, tag = 'input window, operand 11, single buffered']
    #allocation17 [shape = 'u8[512]{0}', space=vmem, size = 0x400, scoped, tag = 'input window, operand 12, single buffered']
    #allocation18 [shape = 's32[1]{0}', space=sflag, size = 0x4, scoped, tag = 'scoped memory for tpu_custom_call.1']
    #allocation19 [shape = 'u8[512]{0}', space=vmem, size = 0x400, scoped, tag = 'input window, operand 14, single buffered']
    #allocation20 [shape = 'u8[4096]{0}', space=vmem, size = 0x1000, scoped, tag = 'output window, operand 0, single buffered']
    %22 = vsyncpa [#allocation3], 0
    %23 = vsyncpa [#allocation6], 0
    %24 = vsyncpa [#allocation9], 0
    %25 = vsyncpa [#allocation12], 0
    %26 = vsyncpa [#allocation15], 0
    %27 = vsyncpa [#allocation18], 0
    %28 = vsyncpa [#allocation4], 0
    // Predicated region
    $region2: #{tpu_custom_call.1} parent=1 // pred_check
      _
    $region3: #{tpu_custom_call.1} parent=1 // pred_check_branch
      %30 = sbr.rel (0) target = $region5
    $region4: #{tpu_custom_call.1} parent=1 // pred_region
      %s32 = ssub.s32 128, 128
      %33 = vsyncadd [#allocation3], %s32
      %s35 = sshll.u32 [#allocation2], 4
      %s36 = int_to_ptr.vmem [resolvable:$true] %s35
      %38 = dma.hbm_to_vmem [thread:$0]  %s0, 128, %s36, [#allocation3]
    $region5: #{tpu_custom_call.1} parent=1 // pred_fallthru
      _
    // Predicated region
    $region6: #{tpu_custom_call.1} parent=1 // pred_check
      _
    $region7: #{tpu_custom_call.1} parent=1 // pred_check_branch
      %40 = sbr.rel (0) target = $region9
    $region8: #{tpu_custom_call.1} parent=1 // pred_region
      _
    $region9: #{tpu_custom_call.1} parent=1 // pred_fallthru
      _
    // Predicated region
    $region10: #{tpu_custom_call.1} parent=1 // pred_check
      _
    $region11: #{tpu_custom_call.1} parent=1 // pred_check_branch
      %42 = sbr.rel (0) target = $region13
    $region12: #{tpu_custom_call.1} parent=1 // pred_region
      %s44 = ssub.s32 256, 256
      %45 = vsyncadd [#allocation6], %s44
      %s46 = sshll.u32 [#allocation5], 4
      %s47 = int_to_ptr.vmem [resolvable:$true] %s46
      %52 = dma.hbm_to_vmem [thread:$0]  %s2, 256, %s47, [#allocation6], 128, 128, 8
    $region13: #{tpu_custom_call.1} parent=1 // pred_fallthru
      _
    // Predicated region
    $region14: #{tpu_custom_call.1} parent=1 // pred_check
      _
    $region15: #{tpu_custom_call.1} parent=1 // pred_check_branch
      %54 = sbr.rel (0) target = $region17
    $region16: #{tpu_custom_call.1} parent=1 // pred_region
      %s56 = ssub.s32 16, 16
      %57 = vsyncadd [#allocation6], %s56
      %s59 = sshll.u32 [#allocation7], 4
      %s60 = int_to_ptr.vmem [resolvable:$true] %s59
      %62 = dma.hbm_to_vmem [thread:$0]  %s3, 16, %s60, [#allocation6]
    $region17: #{tpu_custom_call.1} parent=1 // pred_fallthru
      _
    // Predicated region
    $region18: #{tpu_custom_call.1} parent=1 // pred_check
      _
    $region19: #{tpu_custom_call.1} parent=1 // pred_check_branch
      %64 = sbr.rel (0) target = $region21
    $region20: #{tpu_custom_call.1} parent=1 // pred_region
      %s66 = ssub.s32 128, 128
      %67 = vsyncadd [#allocation9], %s66
      %s69 = sshll.u32 [#allocation8], 4
      %s70 = int_to_ptr.vmem [resolvable:$true] %s69
      %72 = dma.hbm_to_vmem [thread:$0]  %s4, 128, %s70, [#allocation9]
    $region21: #{tpu_custom_call.1} parent=1 // pred_fallthru
      _
    // Predicated region
    $region22: #{tpu_custom_call.1} parent=1 // pred_check
      _
    $region23: #{tpu_custom_call.1} parent=1 // pred_check_branch
      %74 = sbr.rel (0) target = $region25
    $region24: #{tpu_custom_call.1} parent=1 // pred_region
      %s76 = ssub.s32 16, 16
      %77 = vsyncadd [#allocation9], %s76
      %s79 = sshll.u32 [#allocation10], 4
      %s80 = int_to_ptr.vmem [resolvable:$true] %s79
      %82 = dma.hbm_to_vmem [thread:$0]  %s5, 16, %s80, [#allocation9]
    $region25: #{tpu_custom_call.1} parent=1 // pred_fallthru
      _
    // Predicated region
    $region26: #{tpu_custom_call.1} parent=1 // pred_check
      _
    $region27: #{tpu_custom_call.1} parent=1 // pred_check_branch
      %84 = sbr.rel (0) target = $region29
    $region28: #{tpu_custom_call.1} parent=1 // pred_region
      %s86 = ssub.s32 1024, 1024
      %87 = vsyncadd [#allocation12], %s86
      %s88 = sshll.u32 [#allocation11], 4
      %s89 = int_to_ptr.vmem [resolvable:$true] %s88
      %94 = dma.hbm_to_vmem [thread:$0]  %s6, 1024, %s89, [#allocation12], 128, 128, 8
    $region29: #{tpu_custom_call.1} parent=1 // pred_fallthru
      _
    // Predicated region
    $region30: #{tpu_custom_call.1} parent=1 // pred_check
      _
    $region31: #{tpu_custom_call.1} parent=1 // pred_check_branch
      %96 = sbr.rel (0) target = $region33
    $region32: #{tpu_custom_call.1} parent=1 // pred_region
      %s98 = ssub.s32 16, 16
      %99 = vsyncadd [#allocation12], %s98
      %s101 = sshll.u32 [#allocation13], 4
      %s102 = int_to_ptr.vmem [resolvable:$true] %s101
      %104 = dma.hbm_to_vmem [thread:$0]  %s7, 16, %s102, [#allocation12]
    $region33: #{tpu_custom_call.1} parent=1 // pred_fallthru
      _
    // Predicated region
    $region34: #{tpu_custom_call.1} parent=1 // pred_check
      _
    $region35: #{tpu_custom_call.1} parent=1 // pred_check_branch
      %106 = sbr.rel (0) target = $region37
    $region36: #{tpu_custom_call.1} parent=1 // pred_region
      _
    $region37: #{tpu_custom_call.1} parent=1 // pred_fallthru
      _
    // Predicated region
    $region38: #{tpu_custom_call.1} parent=1 // pred_check
      _
    $region39: #{tpu_custom_call.1} parent=1 // pred_check_branch
      %108 = sbr.rel (0) target = $region41
    $region40: #{tpu_custom_call.1} parent=1 // pred_region
      %s110 = ssub.s32 1024, 1024
      %111 = vsyncadd [#allocation15], %s110
      %s112 = sshll.u32 [#allocation14], 4
      %s113 = int_to_ptr.vmem [resolvable:$true] %s112
      %118 = dma.hbm_to_vmem [thread:$0]  %s9, 1024, %s113, [#allocation15], 128, 128, 8
    $region41: #{tpu_custom_call.1} parent=1 // pred_fallthru
      _
    // Predicated region
    $region42: #{tpu_custom_call.1} parent=1 // pred_check
      _
    $region43: #{tpu_custom_call.1} parent=1 // pred_check_branch
      %120 = sbr.rel (0) target = $region45
    $region44: #{tpu_custom_call.1} parent=1 // pred_region
      _
    $region45: #{tpu_custom_call.1} parent=1 // pred_fallthru
      _
    // Predicated region
    $region46: #{tpu_custom_call.1} parent=1 // pred_check
      _
    $region47: #{tpu_custom_call.1} parent=1 // pred_check_branch
      %122 = sbr.rel (0) target = $region49
    $region48: #{tpu_custom_call.1} parent=1 // pred_region
      %s124 = ssub.s32 2048, 2048
      %125 = vsyncadd [#allocation15], %s124
      %s126 = sshll.u32 [#allocation16], 4
      %s127 = int_to_ptr.vmem [resolvable:$true] %s126
      %132 = dma.hbm_to_vmem [thread:$0]  %s11, 2048, %s127, [#allocation15], 128, 128, 8
    $region49: #{tpu_custom_call.1} parent=1 // pred_fallthru
      _
    // Predicated region
    $region50: #{tpu_custom_call.1} parent=1 // pred_check
      _
    $region51: #{tpu_custom_call.1} parent=1 // pred_check_branch
      %134 = sbr.rel (0) target = $region53
    $region52: #{tpu_custom_call.1} parent=1 // pred_region
      %s136 = ssub.s32 16, 16
      %137 = vsyncadd [#allocation18], %s136
      %s139 = sshll.u32 [#allocation17], 4
      %s140 = int_to_ptr.vmem [resolvable:$true] %s139
      %142 = dma.hbm_to_vmem [thread:$0]  %s12, 16, %s140, [#allocation18]
    $region53: #{tpu_custom_call.1} parent=1 // pred_fallthru
      _
    // Predicated region
    $region54: #{tpu_custom_call.1} parent=1 // pred_check
      _
    $region55: #{tpu_custom_call.1} parent=1 // pred_check_branch
      %144 = sbr.rel (0) target = $region57
    $region56: #{tpu_custom_call.1} parent=1 // pred_region
      _
    $region57: #{tpu_custom_call.1} parent=1 // pred_fallthru
      _
    // Predicated region
    $region58: #{tpu_custom_call.1} parent=1 // pred_check
      _
    $region59: #{tpu_custom_call.1} parent=1 // pred_check_branch
      %146 = sbr.rel (0) target = $region61
    $region60: #{tpu_custom_call.1} parent=1 // pred_region
      %s148 = ssub.s32 16, 16
      %149 = vsyncadd [#allocation18], %s148
      %s151 = sshll.u32 [#allocation19], 4
      %s152 = int_to_ptr.vmem [resolvable:$true] %s151
      %154 = dma.hbm_to_vmem [thread:$0]  %s14, 16, %s152, [#allocation18]
    $region61: #{tpu_custom_call.1} parent=1 // pred_fallthru
      _
    // Predicated region
    $region62: #{tpu_custom_call.1} parent=1 // pred_check
      _
    $region63: #{tpu_custom_call.1} parent=1 // pred_check_branch
      %156 = sbr.rel (0) target = $region65
    $region64: #{tpu_custom_call.1} parent=1 // pred_region
      _
    $region65: #{tpu_custom_call.1} parent=1 // pred_fallthru
      _
    // Predicated region
    $region66: #{tpu_custom_call.1} parent=1 // pred_check
      _
    $region67: #{tpu_custom_call.1} parent=1 // pred_check_branch
      %158 = sbr.rel (0) target = $region69
    $region68: #{tpu_custom_call.1} parent=1 // pred_region
      _
    $region69: #{tpu_custom_call.1} parent=1 // pred_fallthru
      _
    // Predicated region
    $region70: #{tpu_custom_call.1} parent=1 // pred_check
      _
    $region71: #{tpu_custom_call.1} parent=1 // pred_check_branch
      %160 = sbr.rel (0) target = $region73
    $region72: #{tpu_custom_call.1} parent=1 // pred_region
      %161 = dma.done [#allocation3], 128
    $region73: #{tpu_custom_call.1} parent=1 // pred_fallthru
      _
    // Predicated region
    $region74: #{tpu_custom_call.1} parent=1 // pred_check
      _
    $region75: #{tpu_custom_call.1} parent=1 // pred_check_branch
      %163 = sbr.rel (0) target = $region77
    $region76: #{tpu_custom_call.1} parent=1 // pred_region
      %164 = dma.done [#allocation6], 256
    $region77: #{tpu_custom_call.1} parent=1 // pred_fallthru
      _
    // Predicated region
    $region78: #{tpu_custom_call.1} parent=1 // pred_check
      _
    $region79: #{tpu_custom_call.1} parent=1 // pred_check_branch
      %166 = sbr.rel (0) target = $region81
    $region80: #{tpu_custom_call.1} parent=1 // pred_region
      %167 = dma.done [#allocation6], 16
    $region81: #{tpu_custom_call.1} parent=1 // pred_fallthru
      _
    // Predicated region
    $region82: #{tpu_custom_call.1} parent=1 // pred_check
      _
    $region83: #{tpu_custom_call.1} parent=1 // pred_check_branch
      %169 = sbr.rel (0) target = $region85
    $region84: #{tpu_custom_call.1} parent=1 // pred_region
      %170 = dma.done [#allocation9], 128
    $region85: #{tpu_custom_call.1} parent=1 // pred_fallthru
      _
    // Predicated region
    $region86: #{tpu_custom_call.1} parent=1 // pred_check
      _
    $region87: #{tpu_custom_call.1} parent=1 // pred_check_branch
      %172 = sbr.rel (0) target = $region89
    $region88: #{tpu_custom_call.1} parent=1 // pred_region
      %173 = dma.done [#allocation9], 16
    $region89: #{tpu_custom_call.1} parent=1 // pred_fallthru
      _
    // Predicated region
    $region90: #{tpu_custom_call.1} parent=1 // pred_check
      _
    $region91: #{tpu_custom_call.1} parent=1 // pred_check_branch
      %175 = sbr.rel (0) target = $region93
    $region92: #{tpu_custom_call.1} parent=1 // pred_region
      %176 = dma.done [#allocation12], 1024
    $region93: #{tpu_custom_call.1} parent=1 // pred_fallthru
      _
    // Predicated region
    $region94: #{tpu_custom_call.1} parent=1 // pred_check
      _
    $region95: #{tpu_custom_call.1} parent=1 // pred_check_branch
      %178 = sbr.rel (0) target = $region97
    $region96: #{tpu_custom_call.1} parent=1 // pred_region
      %179 = dma.done [#allocation12], 16
    $region97: #{tpu_custom_call.1} parent=1 // pred_fallthru
      _
    // Predicated region
    $region98: #{tpu_custom_call.1} parent=1 // pred_check
      _
    $region99: #{tpu_custom_call.1} parent=1 // pred_check_branch
      %181 = sbr.rel (0) target = $region101
    $region100: #{tpu_custom_call.1} parent=1 // pred_region
      %182 = dma.done [#allocation15], 1024
    $region101: #{tpu_custom_call.1} parent=1 // pred_fallthru
      _
    // Predicated region
    $region102: #{tpu_custom_call.1} parent=1 // pred_check
      _
    $region103: #{tpu_custom_call.1} parent=1 // pred_check_branch
      %184 = sbr.rel (0) target = $region105
    $region104: #{tpu_custom_call.1} parent=1 // pred_region
      %185 = dma.done [#allocation15], 2048
    $region105: #{tpu_custom_call.1} parent=1 // pred_fallthru
      _
    // Predicated region
    $region106: #{tpu_custom_call.1} parent=1 // pred_check
      _
    $region107: #{tpu_custom_call.1} parent=1 // pred_check_branch
      %187 = sbr.rel (0) target = $region109
    $region108: #{tpu_custom_call.1} parent=1 // pred_region
      %188 = dma.done [#allocation18], 16
    $region109: #{tpu_custom_call.1} parent=1 // pred_fallthru
      _
    // Predicated region
    $region110: #{tpu_custom_call.1} parent=1 // pred_check
      _
    $region111: #{tpu_custom_call.1} parent=1 // pred_check_branch
      %190 = sbr.rel (0) target = $region113
    $region112: #{tpu_custom_call.1} parent=1 // pred_region
      %191 = dma.done [#allocation18], 16
    $region113: #{tpu_custom_call.1} parent=1 // pred_fallthru
      _
    %v192 = vld [vmem:[#allocation2] sm:$0xff]
    %v193 = vld [vmem:[#allocation5] sm:$0xff]
    %v194 = vld [vmem:[#allocation5 + $0x8] sm:$0xff]
    %v195 = vld [vmem:[#allocation7] sm:$0x1]
    %v197 = vlaneseq
    %v198 = vshrl.u32 %v197, 7
    %v199 = vsub.s32 0, %v198
    %v200 = vrot.slane %v195, %v199
    %vm202 = vcmask 130048
    %v204 = vsel %vm202, %v192, 0
    %206 = vmatprep.subr.mxu0 0.0
    %207 = vmatpush1.msra.mxu0 %v193
    %208 = vmatprep.subr.mxu0 0.0
    %209 = vmatpush1.msra.mxu0 %v194
    %210 = vmatprep.subr.mxu0 0.0
    %211 = vmatpush1.msra.mxu0 0.0
    %212 = vmatprep.subr.mxu0 0.0
    %213 = vmatpush1.msra.mxu0 0.0
    %214 = vmatprep.subr.mxu0 0.0
    %215 = vmatpush1.msra.mxu0 0.0
    %216 = vmatprep.subr.mxu0 0.0
    %217 = vmatpush1.msra.mxu0 0.0
    %218 = vmatprep.subr.mxu0 0.0
    %219 = vmatpush1.msra.mxu0 0.0
    %220 = vmatprep.subr.mxu0 0.0
    %221 = vmatpush1.msra.mxu0 0.0
    %222 = vmatprep.subr.mxu0 0.0
    %223 = vmatpush1.msra.mxu0 0.0
    %224 = vmatprep.subr.mxu0 0.0
    %225 = vmatpush1.msra.mxu0 0.0
    %226 = vmatprep.subr.mxu0 0.0
    %227 = vmatpush1.msra.mxu0 0.0
    %228 = vmatprep.subr.mxu0 0.0
    %229 = vmatpush1.msra.mxu0 0.0
    %230 = vmatprep.subr.mxu0 0.0
    %231 = vmatpush1.msra.mxu0 0.0
    %232 = vmatprep.subr.mxu0 0.0
    %233 = vmatpush1.msra.mxu0 0.0
    %234 = vmatprep.subr.mxu0 0.0
    %235 = vmatpush1.msra.mxu0 0.0
    %236 = vmatprep.subr.mxu0 0.0
    %237 = vmatpush1.msra.mxu0 0.0
    %238 = vmatprep.subr.mxu0 0.0
    %239 = vmatpush1.msra.mxu0 0.0
    %240 = vmatprep.subr.mxu0 0.0
    %241 = vmatpush1.msra.mxu0 0.0
    %242 = vmatprep.subr.mxu0 0.0
    %243 = vmatpush1.msra.mxu0 0.0
    %244 = vmatprep.subr.mxu0 0.0
    %245 = vmatpush1.msra.mxu0 0.0
    %246 = vmatprep.subr.mxu0 0.0
    %247 = vmatpush1.msra.mxu0 0.0
    %248 = vmatprep.subr.mxu0 0.0
    %249 = vmatpush1.msra.mxu0 0.0
    %250 = vmatprep.subr.mxu0 0.0
    %251 = vmatpush1.msra.mxu0 0.0
    %252 = vmatprep.subr.mxu0 0.0
    %253 = vmatpush1.msra.mxu0 0.0
    %254 = vmatprep.subr.mxu0 0.0
    %255 = vmatpush1.msra.mxu0 0.0
    %256 = vmatprep.subr.mxu0 0.0
    %257 = vmatpush1.msra.mxu0 0.0
    %258 = vmatprep.subr.mxu0 0.0
    %259 = vmatpush1.msra.mxu0 0.0
    %260 = vmatprep.subr.mxu0 0.0
    %261 = vmatpush1.msra.mxu0 0.0
    %262 = vmatprep.subr.mxu0 0.0
    %263 = vmatpush1.msra.mxu0 0.0
    %264 = vmatprep.subr.mxu0 0.0
    %265 = vmatpush1.msra.mxu0 0.0
    %266 = vmatprep.subr.mxu0 0.0
    %267 = vmatpush1.msra.mxu0 0.0
    %268 = vmatprep.subr.mxu0 0.0
    %269 = vmatpush1.msra.mxu0 0.0
    %270 = vmatprep.mubr.f32.mxu0 0.0
    %271 = vmatmul.mubr.f32.gmra.mrb[0].mxu0 %v204
    %v272 = vpop.f32.mrb[0].mxu0
    %v273 = vadd.f32 %v200, %v272
    %v274 = vpop.f32.mrb[0].mxu0
    %275 = vdwg.mxu0
    %v276 = vmax.f32 %v273, 0.0
    %v277 = vld [vmem:[%s1] sm:$0xff]
    %v278 = vld [vmem:[%s1 + $0x8] sm:$0xff]
    %v279 = vld [vmem:[%s1 + $0x10] sm:$0xff]
    %v280 = vld [vmem:[%s1 + $0x18] sm:$0xff]
    %v281 = vld [vmem:[%s1 + $0x20] sm:$0xff]
    %v282 = vld [vmem:[%s1 + $0x28] sm:$0xff]
    %v283 = vld [vmem:[%s1 + $0x30] sm:$0xff]
    %v284 = vld [vmem:[%s1 + $0x38] sm:$0xff]
    %v285 = vld [vmem:[#allocation8] sm:$0x3f]
    %v286 = vld [vmem:[#allocation10] sm:$0x1]
    %v288 = vlaneseq
    %v289 = vshrl.u32 %v288, 7
    %v290 = vsub.s32 0, %v289
    %v291 = vrot.slane %v286, %v290
    %vm293 = vcmask 48128
    %v295 = vsel %vm293, %v277, 0
    %v298 = vsel %vm293, %v278, 0
    %v301 = vsel %vm293, %v279, 0
    %v304 = vsel %vm293, %v280, 0
    %v307 = vsel %vm293, %v281, 0
    %v310 = vsel %vm293, %v282, 0
    %v313 = vsel %vm293, %v283, 0
    %v316 = vsel %vm293, %v284, 0
    %vm318 = vcmask 1045504
    %v320 = vsel %vm318, %v285, 0
    %322 = vmatprep.subr.mxu0 0.0
    %323 = vmatpush1.msra.mxu0 %v320
    %324 = vmatprep.subr.mxu0 0.0
    %325 = vmatpush1.msra.mxu0 0.0
    %326 = vmatprep.subr.mxu0 0.0
    %327 = vmatpush1.msra.mxu0 0.0
    %328 = vmatprep.subr.mxu0 0.0
    %329 = vmatpush1.msra.mxu0 0.0
    %330 = vmatprep.subr.mxu0 0.0
    %331 = vmatpush1.msra.mxu0 0.0
    %332 = vmatprep.subr.mxu0 0.0
    %333 = vmatpush1.msra.mxu0 0.0
    %334 = vmatprep.subr.mxu0 0.0
    %335 = vmatpush1.msra.mxu0 0.0
    %336 = vmatprep.subr.mxu0 0.0
    %337 = vmatpush1.msra.mxu0 0.0
    %338 = vmatprep.subr.mxu0 0.0
    %339 = vmatpush1.msra.mxu0 0.0
    %340 = vmatprep.subr.mxu0 0.0
    %341 = vmatpush1.msra.mxu0 0.0
    %342 = vmatprep.subr.mxu0 0.0
    %343 = vmatpush1.msra.mxu0 0.0
    %344 = vmatprep.subr.mxu0 0.0
    %345 = vmatpush1.msra.mxu0 0.0
    %346 = vmatprep.subr.mxu0 0.0
    %347 = vmatpush1.msra.mxu0 0.0
    %348 = vmatprep.subr.mxu0 0.0
    %349 = vmatpush1.msra.mxu0 0.0
    %350 = vmatprep.subr.mxu0 0.0
    %351 = vmatpush1.msra.mxu0 0.0
    %352 = vmatprep.subr.mxu0 0.0
    %353 = vmatpush1.msra.mxu0 0.0
    %354 = vmatprep.subr.mxu0 0.0
    %355 = vmatpush1.msra.mxu0 0.0
    %356 = vmatprep.subr.mxu0 0.0
    %357 = vmatpush1.msra.mxu0 0.0
    %358 = vmatprep.subr.mxu0 0.0
    %359 = vmatpush1.msra.mxu0 0.0
    %360 = vmatprep.subr.mxu0 0.0
    %361 = vmatpush1.msra.mxu0 0.0
    %362 = vmatprep.subr.mxu0 0.0
    %363 = vmatpush1.msra.mxu0 0.0
    %364 = vmatprep.subr.mxu0 0.0
    %365 = vmatpush1.msra.mxu0 0.0
    %366 = vmatprep.subr.mxu0 0.0
    %367 = vmatpush1.msra.mxu0 0.0
    %368 = vmatprep.subr.mxu0 0.0
    %369 = vmatpush1.msra.mxu0 0.0
    %370 = vmatprep.subr.mxu0 0.0
    %371 = vmatpush1.msra.mxu0 0.0
    %372 = vmatprep.subr.mxu0 0.0
    %373 = vmatpush1.msra.mxu0 0.0
    %374 = vmatprep.subr.mxu0 0.0
    %375 = vmatpush1.msra.mxu0 0.0
    %376 = vmatprep.subr.mxu0 0.0
    %377 = vmatpush1.msra.mxu0 0.0
    %378 = vmatprep.subr.mxu0 0.0
    %379 = vmatpush1.msra.mxu0 0.0
    %380 = vmatprep.subr.mxu0 0.0
    %381 = vmatpush1.msra.mxu0 0.0
    %382 = vmatprep.subr.mxu0 0.0
    %383 = vmatpush1.msra.mxu0 0.0
    %384 = vmatprep.subr.mxu0 0.0
    %385 = vmatpush1.msra.mxu0 0.0
    %386 = vmatprep.mubr.f32.mxu0 0.0
    %387 = vmatmul.mubr.f32.gmra.mrb[0].mxu0 %v295
    %v388 = vpop.f32.mrb[0].mxu0
    %v389 = vadd.f32 %v291, %v388
    %v390 = vpop.f32.mrb[0].mxu0
    %391 = vmatprep.mubr.f32.mxu0 0.0
    %392 = vmatmul.mubr.f32.gmra.mrb[0].mxu0 %v298
    %v393 = vpop.f32.mrb[0].mxu0
    %v394 = vadd.f32 %v291, %v393
    %v395 = vpop.f32.mrb[0].mxu0
    %396 = vmatprep.mubr.f32.mxu0 0.0
    %397 = vmatmul.mubr.f32.gmra.mrb[0].mxu0 %v301
    %v398 = vpop.f32.mrb[0].mxu0
    %v399 = vadd.f32 %v291, %v398
    %v400 = vpop.f32.mrb[0].mxu0
    %401 = vmatprep.mubr.f32.mxu0 0.0
    %402 = vmatmul.mubr.f32.gmra.mrb[0].mxu0 %v304
    %v403 = vpop.f32.mrb[0].mxu0
    %v404 = vadd.f32 %v291, %v403
    %v405 = vpop.f32.mrb[0].mxu0
    %406 = vmatprep.mubr.f32.mxu0 0.0
    %407 = vmatmul.mubr.f32.gmra.mrb[0].mxu0 %v307
    %v408 = vpop.f32.mrb[0].mxu0
    %v409 = vadd.f32 %v291, %v408
    %v410 = vpop.f32.mrb[0].mxu0
    %411 = vmatprep.mubr.f32.mxu0 0.0
    %412 = vmatmul.mubr.f32.gmra.mrb[0].mxu0 %v310
    %v413 = vpop.f32.mrb[0].mxu0
    %v414 = vadd.f32 %v291, %v413
    %v415 = vpop.f32.mrb[0].mxu0
    %416 = vmatprep.mubr.f32.mxu0 0.0
    %417 = vmatmul.mubr.f32.gmra.mrb[0].mxu0 %v313
    %v418 = vpop.f32.mrb[0].mxu0
    %v419 = vadd.f32 %v291, %v418
    %v420 = vpop.f32.mrb[0].mxu0
    %421 = vmatprep.mubr.f32.mxu0 0.0
    %422 = vmatmul.mubr.f32.gmra.mrb[0].mxu0 %v316
    %v423 = vpop.f32.mrb[0].mxu0
    %v424 = vadd.f32 %v291, %v423
    %v425 = vpop.f32.mrb[0].mxu0
    %426 = vdwg.mxu0
    %v427 = vmax.f32 %v389, 0.0
    %v428 = vmax.f32 %v394, 0.0
    %v429 = vmax.f32 %v399, 0.0
    %v430 = vmax.f32 %v404, 0.0
    %v431 = vmax.f32 %v409, 0.0
    %v432 = vmax.f32 %v414, 0.0
    %v433 = vmax.f32 %v419, 0.0
    %v434 = vmax.f32 %v424, 0.0
    %v435 = vld [vmem:[#allocation11] sm:$0xff]
    %v436 = vld [vmem:[#allocation11 + $0x8] sm:$0xff]
    %v437 = vld [vmem:[#allocation11 + $0x10] sm:$0xff]
    %v438 = vld [vmem:[#allocation11 + $0x18] sm:$0xff]
    %v439 = vld [vmem:[#allocation11 + $0x20] sm:$0xff]
    %v440 = vld [vmem:[#allocation11 + $0x28] sm:$0xff]
    %v441 = vld [vmem:[#allocation11 + $0x30] sm:$0xff]
    %v442 = vld [vmem:[#allocation11 + $0x38] sm:$0xff]
    %v443 = vld [vmem:[#allocation13] sm:$0x1]
    %v445 = vlaneseq
    %v446 = vshrl.u32 %v445, 7
    %v447 = vsub.s32 0, %v446
    %v448 = vrot.slane %v443, %v447
    %vm450 = vcmask 523264
    %v452 = vsel %vm450, %v427, 0
    %v455 = vsel %vm450, %v428, 0
    %v458 = vsel %vm450, %v429, 0
    %v461 = vsel %vm450, %v430, 0
    %v464 = vsel %vm450, %v431, 0
    %v467 = vsel %vm450, %v432, 0
    %v470 = vsel %vm450, %v433, 0
    %v473 = vsel %vm450, %v434, 0
    %475 = vmatprep.subr.mxu0 0.0
    %476 = vmatpush1.msra.mxu0 %v435
    %477 = vmatprep.subr.mxu0 0.0
    %478 = vmatpush1.msra.mxu0 %v436
    %479 = vmatprep.subr.mxu0 0.0
    %480 = vmatpush1.msra.mxu0 %v437
    %481 = vmatprep.subr.mxu0 0.0
    %482 = vmatpush1.msra.mxu0 %v438
    %483 = vmatprep.subr.mxu0 0.0
    %484 = vmatpush1.msra.mxu0 %v439
    %485 = vmatprep.subr.mxu0 0.0
    %486 = vmatpush1.msra.mxu0 %v440
    %487 = vmatprep.subr.mxu0 0.0
    %488 = vmatpush1.msra.mxu0 %v441
    %489 = vmatprep.subr.mxu0 0.0
    %490 = vmatpush1.msra.mxu0 %v442
    %491 = vmatprep.subr.mxu0 0.0
    %492 = vmatpush1.msra.mxu0 0.0
    %493 = vmatprep.subr.mxu0 0.0
    %494 = vmatpush1.msra.mxu0 0.0
    %495 = vmatprep.subr.mxu0 0.0
    %496 = vmatpush1.msra.mxu0 0.0
    %497 = vmatprep.subr.mxu0 0.0
    %498 = vmatpush1.msra.mxu0 0.0
    %499 = vmatprep.subr.mxu0 0.0
    %500 = vmatpush1.msra.mxu0 0.0
    %501 = vmatprep.subr.mxu0 0.0
    %502 = vmatpush1.msra.mxu0 0.0
    %503 = vmatprep.subr.mxu0 0.0
    %504 = vmatpush1.msra.mxu0 0.0
    %505 = vmatprep.subr.mxu0 0.0
    %506 = vmatpush1.msra.mxu0 0.0
    %507 = vmatprep.subr.mxu0 0.0
    %508 = vmatpush1.msra.mxu0 0.0
    %509 = vmatprep.subr.mxu0 0.0
    %510 = vmatpush1.msra.mxu0 0.0
    %511 = vmatprep.subr.mxu0 0.0
    %512 = vmatpush1.msra.mxu0 0.0
    %513 = vmatprep.subr.mxu0 0.0
    %514 = vmatpush1.msra.mxu0 0.0
    %515 = vmatprep.subr.mxu0 0.0
    %516 = vmatpush1.msra.mxu0 0.0
    %517 = vmatprep.subr.mxu0 0.0
    %518 = vmatpush1.msra.mxu0 0.0
    %519 = vmatprep.subr.mxu0 0.0
    %520 = vmatpush1.msra.mxu0 0.0
    %521 = vmatprep.subr.mxu0 0.0
    %522 = vmatpush1.msra.mxu0 0.0
    %523 = vmatprep.subr.mxu0 0.0
    %524 = vmatpush1.msra.mxu0 0.0
    %525 = vmatprep.subr.mxu0 0.0
    %526 = vmatpush1.msra.mxu0 0.0
    %527 = vmatprep.subr.mxu0 0.0
    %528 = vmatpush1.msra.mxu0 0.0
    %529 = vmatprep.subr.mxu0 0.0
    %530 = vmatpush1.msra.mxu0 0.0
    %531 = vmatprep.subr.mxu0 0.0
    %532 = vmatpush1.msra.mxu0 0.0
    %533 = vmatprep.subr.mxu0 0.0
    %534 = vmatpush1.msra.mxu0 0.0
    %535 = vmatprep.subr.mxu0 0.0
    %536 = vmatpush1.msra.mxu0 0.0
    %537 = vmatprep.subr.mxu0 0.0
    %538 = vmatpush1.msra.mxu0 0.0
    %539 = vmatprep.mubr.f32.mxu0 0.0
    %540 = vmatmul.mubr.f32.gmra.mrb[0].mxu0 %v452
    %v541 = vpop.f32.mrb[0].mxu0
    %v542 = vadd.f32 %v448, %v541
    %v543 = vpop.f32.mrb[0].mxu0
    %544 = vmatprep.mubr.f32.mxu0 0.0
    %545 = vmatmul.mubr.f32.gmra.mrb[0].mxu0 %v455
    %v546 = vpop.f32.mrb[0].mxu0
    %v547 = vadd.f32 %v448, %v546
    %v548 = vpop.f32.mrb[0].mxu0
    %549 = vmatprep.mubr.f32.mxu0 0.0
    %550 = vmatmul.mubr.f32.gmra.mrb[0].mxu0 %v458
    %v551 = vpop.f32.mrb[0].mxu0
    %v552 = vadd.f32 %v448, %v551
    %v553 = vpop.f32.mrb[0].mxu0
    %554 = vmatprep.mubr.f32.mxu0 0.0
    %555 = vmatmul.mubr.f32.gmra.mrb[0].mxu0 %v461
    %v556 = vpop.f32.mrb[0].mxu0
    %v557 = vadd.f32 %v448, %v556
    %v558 = vpop.f32.mrb[0].mxu0
    %559 = vmatprep.mubr.f32.mxu0 0.0
    %560 = vmatmul.mubr.f32.gmra.mrb[0].mxu0 %v464
    %v561 = vpop.f32.mrb[0].mxu0
    %v562 = vadd.f32 %v448, %v561
    %v563 = vpop.f32.mrb[0].mxu0
    %564 = vmatprep.mubr.f32.mxu0 0.0
    %565 = vmatmul.mubr.f32.gmra.mrb[0].mxu0 %v467
    %v566 = vpop.f32.mrb[0].mxu0
    %v567 = vadd.f32 %v448, %v566
    %v568 = vpop.f32.mrb[0].mxu0
    %569 = vmatprep.mubr.f32.mxu0 0.0
    %570 = vmatmul.mubr.f32.gmra.mrb[0].mxu0 %v470
    %v571 = vpop.f32.mrb[0].mxu0
    %v572 = vadd.f32 %v448, %v571
    %v573 = vpop.f32.mrb[0].mxu0
    %574 = vmatprep.mubr.f32.mxu0 0.0
    %575 = vmatmul.mubr.f32.gmra.mrb[0].mxu0 %v473
    %v576 = vpop.f32.mrb[0].mxu0
    %v577 = vadd.f32 %v448, %v576
    %v578 = vpop.f32.mrb[0].mxu0
    %579 = vdwg.mxu0
    %v580 = vmax.f32 %v542, 0.0
    %v581 = vmax.f32 %v547, 0.0
    %v582 = vmax.f32 %v552, 0.0
    %v583 = vmax.f32 %v557, 0.0
    %v584 = vmax.f32 %v562, 0.0
    %v585 = vmax.f32 %v567, 0.0
    %v586 = vmax.f32 %v572, 0.0
    %v587 = vmax.f32 %v577, 0.0
    %v588 = vld [vmem:[%s8] sm:$0xff]
    %v589 = vld [vmem:[%s8 + $0x8] sm:$0xff]
    %v590 = vld [vmem:[%s8 + $0x10] sm:$0xff]
    %v591 = vld [vmem:[%s8 + $0x18] sm:$0xff]
    %v592 = vld [vmem:[%s8 + $0x20] sm:$0xff]
    %v593 = vld [vmem:[%s8 + $0x28] sm:$0xff]
    %v594 = vld [vmem:[%s8 + $0x30] sm:$0xff]
    %v595 = vld [vmem:[%s8 + $0x38] sm:$0xff]
    %v596 = vld [vmem:[%s8 + $0x40] sm:$0xff]
    %v597 = vld [vmem:[%s8 + $0x48] sm:$0xff]
    %v598 = vld [vmem:[%s8 + $0x50] sm:$0xff]
    %v599 = vld [vmem:[%s8 + $0x58] sm:$0xff]
    %v600 = vld [vmem:[%s8 + $0x60] sm:$0xff]
    %v601 = vld [vmem:[%s8 + $0x68] sm:$0xff]
    %v602 = vld [vmem:[%s8 + $0x70] sm:$0xff]
    %v603 = vld [vmem:[%s8 + $0x78] sm:$0xff]
    %604 = vmatprep.subr.mxu0 0.0
    %605 = vmatpush1.msra.mxu0 %v588
    %606 = vmatprep.subr.mxu0 0.0
    %607 = vmatpush1.msra.mxu0 %v589
    %608 = vmatprep.subr.mxu0 0.0
    %609 = vmatpush1.msra.mxu0 %v590
    %610 = vmatprep.subr.mxu0 0.0
    %611 = vmatpush1.msra.mxu0 %v591
    %612 = vmatprep.subr.mxu0 0.0
    %613 = vmatpush1.msra.mxu0 %v592
    %614 = vmatprep.subr.mxu0 0.0
    %615 = vmatpush1.msra.mxu0 %v593
    %616 = vmatprep.subr.mxu0 0.0
    %617 = vmatpush1.msra.mxu0 %v594
    %618 = vmatprep.subr.mxu0 0.0
    %619 = vmatpush1.msra.mxu0 %v595
    %620 = vmatprep.subr.mxu0 0.0
    %621 = vmatpush1.msra.mxu0 %v596
    %622 = vmatprep.subr.mxu0 0.0
    %623 = vmatpush1.msra.mxu0 %v597
    %624 = vmatprep.subr.mxu0 0.0
    %625 = vmatpush1.msra.mxu0 %v598
    %626 = vmatprep.subr.mxu0 0.0
    %627 = vmatpush1.msra.mxu0 %v599
    %628 = vmatprep.subr.mxu0 0.0
    %629 = vmatpush1.msra.mxu0 %v600
    %630 = vmatprep.subr.mxu0 0.0
    %631 = vmatpush1.msra.mxu0 %v601
    %632 = vmatprep.subr.mxu0 0.0
    %633 = vmatpush1.msra.mxu0 %v602
    %634 = vmatprep.subr.mxu0 0.0
    %635 = vmatpush1.msra.mxu0 %v603
    %636 = vmatprep.subr.mxu0 0.0
    %637 = vmatpush1.msra.mxu0 0.0
    %638 = vmatprep.subr.mxu0 0.0
    %639 = vmatpush1.msra.mxu0 0.0
    %640 = vmatprep.subr.mxu0 0.0
    %641 = vmatpush1.msra.mxu0 0.0
    %642 = vmatprep.subr.mxu0 0.0
    %643 = vmatpush1.msra.mxu0 0.0
    %644 = vmatprep.subr.mxu0 0.0
    %645 = vmatpush1.msra.mxu0 0.0
    %646 = vmatprep.subr.mxu0 0.0
    %647 = vmatpush1.msra.mxu0 0.0
    %648 = vmatprep.subr.mxu0 0.0
    %649 = vmatpush1.msra.mxu0 0.0
    %650 = vmatprep.subr.mxu0 0.0
    %651 = vmatpush1.msra.mxu0 0.0
    %652 = vmatprep.subr.mxu0 0.0
    %653 = vmatpush1.msra.mxu0 0.0
    %654 = vmatprep.subr.mxu0 0.0
    %655 = vmatpush1.msra.mxu0 0.0
    %656 = vmatprep.subr.mxu0 0.0
    %657 = vmatpush1.msra.mxu0 0.0
    %658 = vmatprep.subr.mxu0 0.0
    %659 = vmatpush1.msra.mxu0 0.0
    %660 = vmatprep.subr.mxu0 0.0
    %661 = vmatpush1.msra.mxu0 0.0
    %662 = vmatprep.subr.mxu0 0.0
    %663 = vmatpush1.msra.mxu0 0.0
    %664 = vmatprep.subr.mxu0 0.0
    %665 = vmatpush1.msra.mxu0 0.0
    %666 = vmatprep.subr.mxu0 0.0
    %667 = vmatpush1.msra.mxu0 0.0
    %668 = vmatprep.mubr.f32.mxu0 0.0
    %669 = vmatmul.mubr.f32.gmra.mrb[0].mxu0 %v276
    %v670 = vpop.f32.mrb[0].mxu0
    %v671 = vadd.f32 0.0, %v670
    %v672 = vpop.f32.mrb[0].mxu0
    %673 = vdwg.mxu0
    %v674 = vld [vmem:[#allocation14] sm:$0xff]
    %v675 = vld [vmem:[#allocation14 + $0x8] sm:$0xff]
    %v676 = vld [vmem:[#allocation14 + $0x10] sm:$0xff]
    %v677 = vld [vmem:[#allocation14 + $0x18] sm:$0xff]
    %v678 = vld [vmem:[#allocation14 + $0x20] sm:$0xff]
    %v679 = vld [vmem:[#allocation14 + $0x28] sm:$0xff]
    %v680 = vld [vmem:[#allocation14 + $0x30] sm:$0xff]
    %v681 = vld [vmem:[#allocation14 + $0x38] sm:$0xff]
    %v683 = vsel %vm450, %v580, 0
    %v686 = vsel %vm450, %v581, 0
    %v689 = vsel %vm450, %v582, 0
    %v692 = vsel %vm450, %v583, 0
    %v695 = vsel %vm450, %v584, 0
    %v698 = vsel %vm450, %v585, 0
    %v701 = vsel %vm450, %v586, 0
    %v704 = vsel %vm450, %v587, 0
    %706 = vmatprep.subr.mxu0 0.0
    %707 = vmatpush1.msra.mxu0 %v674
    %708 = vmatprep.subr.mxu0 0.0
    %709 = vmatpush1.msra.mxu0 %v675
    %710 = vmatprep.subr.mxu0 0.0
    %711 = vmatpush1.msra.mxu0 %v676
    %712 = vmatprep.subr.mxu0 0.0
    %713 = vmatpush1.msra.mxu0 %v677
    %714 = vmatprep.subr.mxu0 0.0
    %715 = vmatpush1.msra.mxu0 %v678
    %716 = vmatprep.subr.mxu0 0.0
    %717 = vmatpush1.msra.mxu0 %v679
    %718 = vmatprep.subr.mxu0 0.0
    %719 = vmatpush1.msra.mxu0 %v680
    %720 = vmatprep.subr.mxu0 0.0
    %721 = vmatpush1.msra.mxu0 %v681
    %722 = vmatprep.subr.mxu0 0.0
    %723 = vmatpush1.msra.mxu0 0.0
    %724 = vmatprep.subr.mxu0 0.0
    %725 = vmatpush1.msra.mxu0 0.0
    %726 = vmatprep.subr.mxu0 0.0
    %727 = vmatpush1.msra.mxu0 0.0
    %728 = vmatprep.subr.mxu0 0.0
    %729 = vmatpush1.msra.mxu0 0.0
    %730 = vmatprep.subr.mxu0 0.0
    %731 = vmatpush1.msra.mxu0 0.0
    %732 = vmatprep.subr.mxu0 0.0
    %733 = vmatpush1.msra.mxu0 0.0
    %734 = vmatprep.subr.mxu0 0.0
    %735 = vmatpush1.msra.mxu0 0.0
    %736 = vmatprep.subr.mxu0 0.0
    %737 = vmatpush1.msra.mxu0 0.0
    %738 = vmatprep.subr.mxu0 0.0
    %739 = vmatpush1.msra.mxu0 0.0
    %740 = vmatprep.subr.mxu0 0.0
    %741 = vmatpush1.msra.mxu0 0.0
    %742 = vmatprep.subr.mxu0 0.0
    %743 = vmatpush1.msra.mxu0 0.0
    %744 = vmatprep.subr.mxu0 0.0
    %745 = vmatpush1.msra.mxu0 0.0
    %746 = vmatprep.subr.mxu0 0.0
    %747 = vmatpush1.msra.mxu0 0.0
    %748 = vmatprep.subr.mxu0 0.0
    %749 = vmatpush1.msra.mxu0 0.0
    %750 = vmatprep.subr.mxu0 0.0
    %751 = vmatpush1.msra.mxu0 0.0
    %752 = vmatprep.subr.mxu0 0.0
    %753 = vmatpush1.msra.mxu0 0.0
    %754 = vmatprep.subr.mxu0 0.0
    %755 = vmatpush1.msra.mxu0 0.0
    %756 = vmatprep.subr.mxu0 0.0
    %757 = vmatpush1.msra.mxu0 0.0
    %758 = vmatprep.subr.mxu0 0.0
    %759 = vmatpush1.msra.mxu0 0.0
    %760 = vmatprep.subr.mxu0 0.0
    %761 = vmatpush1.msra.mxu0 0.0
    %762 = vmatprep.subr.mxu0 0.0
    %763 = vmatpush1.msra.mxu0 0.0
    %764 = vmatprep.subr.mxu0 0.0
    %765 = vmatpush1.msra.mxu0 0.0
    %766 = vmatprep.subr.mxu0 0.0
    %767 = vmatpush1.msra.mxu0 0.0
    %768 = vmatprep.subr.mxu0 0.0
    %769 = vmatpush1.msra.mxu0 0.0
    %770 = vmatprep.mubr.f32.mxu0 0.0
    %771 = vmatmul.mubr.f32.gmra.mrb[0].mxu0 %v683
    %v772 = vpop.f32.mrb[0].mxu0
    %v773 = vadd.f32 0.0, %v772
    %v774 = vpop.f32.mrb[0].mxu0
    %775 = vmatprep.mubr.f32.mxu0 0.0
    %776 = vmatmul.mubr.f32.gmra.mrb[0].mxu0 %v686
    %v777 = vpop.f32.mrb[0].mxu0
    %v778 = vadd.f32 0.0, %v777
    %v779 = vpop.f32.mrb[0].mxu0
    %780 = vmatprep.mubr.f32.mxu0 0.0
    %781 = vmatmul.mubr.f32.gmra.mrb[0].mxu0 %v689
    %v782 = vpop.f32.mrb[0].mxu0
    %v783 = vadd.f32 0.0, %v782
    %v784 = vpop.f32.mrb[0].mxu0
    %785 = vmatprep.mubr.f32.mxu0 0.0
    %786 = vmatmul.mubr.f32.gmra.mrb[0].mxu0 %v692
    %v787 = vpop.f32.mrb[0].mxu0
    %v788 = vadd.f32 0.0, %v787
    %v789 = vpop.f32.mrb[0].mxu0
    %790 = vmatprep.mubr.f32.mxu0 0.0
    %791 = vmatmul.mubr.f32.gmra.mrb[0].mxu0 %v695
    %v792 = vpop.f32.mrb[0].mxu0
    %v793 = vadd.f32 0.0, %v792
    %v794 = vpop.f32.mrb[0].mxu0
    %795 = vmatprep.mubr.f32.mxu0 0.0
    %796 = vmatmul.mubr.f32.gmra.mrb[0].mxu0 %v698
    %v797 = vpop.f32.mrb[0].mxu0
    %v798 = vadd.f32 0.0, %v797
    %v799 = vpop.f32.mrb[0].mxu0
    %800 = vmatprep.mubr.f32.mxu0 0.0
    %801 = vmatmul.mubr.f32.gmra.mrb[0].mxu0 %v701
    %v802 = vpop.f32.mrb[0].mxu0
    %v803 = vadd.f32 0.0, %v802
    %v804 = vpop.f32.mrb[0].mxu0
    %805 = vmatprep.mubr.f32.mxu0 0.0
    %806 = vmatmul.mubr.f32.gmra.mrb[0].mxu0 %v704
    %v807 = vpop.f32.mrb[0].mxu0
    %v808 = vadd.f32 0.0, %v807
    %v809 = vpop.f32.mrb[0].mxu0
    %810 = vdwg.mxu0
    %v812 = vcombine.high %v671, %v671
    %v814 = vunpack.c.l.s4 1966171168
    %v815 = vunpack.c.0.s8 %v814
    %v816 = vlaneseq
    %v817 = vshrl.u32 %v816, 7
    %v818 = vsub.s32 %v815, %v817
    %v819 = vrot.slane %v671, %v818
    %v821 = vunpack.c.l.s4 1966171168
    %v822 = vunpack.c.0.s8 %v821
    %v823 = vlaneseq
    %v824 = vshrl.u32 %v823, 7
    %v825 = vsub.s32 %v822, %v824
    %v826 = vrot.slane %v812, %v825
    %v827 = vcombine.high %v819, %v819
    %v828 = vcombine.high %v826, %v826
    %v830 = vunpack.c.l.s4 1966171168
    %v831 = vunpack.c.0.s8 %v830
    %v832 = vlaneseq
    %v833 = vshrl.u32 %v832, 7
    %v834 = vsub.s32 %v831, %v833
    %v835 = vrot.slane %v819, %v834
    %v837 = vunpack.c.l.s4 1966171168
    %v838 = vunpack.c.0.s8 %v837
    %v839 = vlaneseq
    %v840 = vshrl.u32 %v839, 7
    %v841 = vsub.s32 %v838, %v840
    %v842 = vrot.slane %v826, %v841
    %v844 = vunpack.c.l.s4 1966171168
    %v845 = vunpack.c.0.s8 %v844
    %v846 = vlaneseq
    %v847 = vshrl.u32 %v846, 7
    %v848 = vsub.s32 %v845, %v847
    %v849 = vrot.slane %v827, %v848
    %v851 = vunpack.c.l.s4 1966171168
    %v852 = vunpack.c.0.s8 %v851
    %v853 = vlaneseq
    %v854 = vshrl.u32 %v853, 7
    %v855 = vsub.s32 %v852, %v854
    %v856 = vrot.slane %v828, %v855
    %v857 = vcombine.high %v835, %v835
    %v858 = vcombine.high %v842, %v842
    %v859 = vcombine.high %v849, %v849
    %v860 = vcombine.high %v856, %v856
    %v861 = vlaneseq
    %v862 = vshrl.u32 %v861, 7
    %v863 = vsub.s32 0, %v862
    %v864 = vrot.slane %v835, %v863
    %v865 = vlaneseq
    %v866 = vshrl.u32 %v865, 7
    %v867 = vsub.s32 0, %v866
    %v868 = vrot.slane %v849, %v867
    %v869 = vlaneseq
    %v870 = vshrl.u32 %v869, 7
    %v871 = vsub.s32 0, %v870
    %v872 = vrot.slane %v857, %v871
    %v873 = vlaneseq
    %v874 = vshrl.u32 %v873, 7
    %v875 = vsub.s32 0, %v874
    %v876 = vrot.slane %v859, %v875
    %v877 = vlaneseq
    %v878 = vshrl.u32 %v877, 7
    %v879 = vsub.s32 0, %v878
    %v880 = vrot.slane %v842, %v879
    %v881 = vlaneseq
    %v882 = vshrl.u32 %v881, 7
    %v883 = vsub.s32 0, %v882
    %v884 = vrot.slane %v856, %v883
    %v885 = vlaneseq
    %v886 = vshrl.u32 %v885, 7
    %v887 = vsub.s32 0, %v886
    %v888 = vrot.slane %v858, %v887
    %v889 = vlaneseq
    %v890 = vshrl.u32 %v889, 7
    %v891 = vsub.s32 0, %v890
    %v892 = vrot.slane %v860, %v891
    %v901 = vmul.f32 %v773, %v864
    %v902 = vmul.f32 %v778, %v868
    %v903 = vmul.f32 %v783, %v872
    %v904 = vmul.f32 %v788, %v876
    %v905 = vmul.f32 %v793, %v880
    %v906 = vmul.f32 %v798, %v884
    %v907 = vmul.f32 %v803, %v888
    %v908 = vmul.f32 %v808, %v892
    %909 = vadd.xlane.f32.xlu0 %v901
    %v910 = vpop.xlane.xlu0 %909
    %911 = vadd.xlane.f32.xlu0 %v902
    %v912 = vpop.xlane.xlu0 %911
    %913 = vadd.xlane.f32.xlu0 %v903
    %v914 = vpop.xlane.xlu0 %913
    %915 = vadd.xlane.f32.xlu0 %v904
    %v916 = vpop.xlane.xlu0 %915
    %917 = vadd.xlane.f32.xlu0 %v905
    %v918 = vpop.xlane.xlu0 %917
    %919 = vadd.xlane.f32.xlu0 %v906
    %v920 = vpop.xlane.xlu0 %919
    %921 = vadd.xlane.f32.xlu0 %v907
    %v922 = vpop.xlane.xlu0 %921
    %923 = vadd.xlane.f32.xlu0 %v908
    %v924 = vpop.xlane.xlu0 %923
    %v933 = vlaneseq
    %v934 = vand.u32 %v933, 127
    %v935 = vlaneseq
    %v936 = vshrl.u32 %v935, 7
    %v937 = vsub.s32 %v934, %v936
    %v938 = vrot.slane %v910, %v937
    %v939 = vlaneseq
    %v940 = vshrl.u32 %v939, 7
    %v941 = vsub.s32 %v934, %v940
    %v942 = vrot.slane %v912, %v941
    %v943 = vlaneseq
    %v944 = vshrl.u32 %v943, 7
    %v945 = vsub.s32 %v934, %v944
    %v946 = vrot.slane %v914, %v945
    %v947 = vlaneseq
    %v948 = vshrl.u32 %v947, 7
    %v949 = vsub.s32 %v934, %v948
    %v950 = vrot.slane %v916, %v949
    %v951 = vlaneseq
    %v952 = vshrl.u32 %v951, 7
    %v953 = vsub.s32 %v934, %v952
    %v954 = vrot.slane %v918, %v953
    %v955 = vlaneseq
    %v956 = vshrl.u32 %v955, 7
    %v957 = vsub.s32 %v934, %v956
    %v958 = vrot.slane %v920, %v957
    %v959 = vlaneseq
    %v960 = vshrl.u32 %v959, 7
    %v961 = vsub.s32 %v934, %v960
    %v962 = vrot.slane %v922, %v961
    %v963 = vlaneseq
    %v964 = vshrl.u32 %v963, 7
    %v965 = vsub.s32 %v934, %v964
    %v966 = vrot.slane %v924, %v965
    %vm967 = vcmask 1041409
    %v968 = vsel %vm967, %v942, %v938
    %vm969 = vcmask 1042434
    %v970 = vsel %vm969, %v946, %v968
    %vm971 = vcmask 1043459
    %v972 = vsel %vm971, %v950, %v970
    %vm973 = vcmask 1044484
    %v974 = vsel %vm973, %v954, %v972
    %vm975 = vcmask 1045509
    %v976 = vsel %vm975, %v958, %v974
    %vm977 = vcmask 1046534
    %v978 = vsel %vm977, %v962, %v976
    %vm979 = vcmask 1047559
    %v980 = vsel %vm979, %v966, %v978
    %vm982 = vcmask 64512
    %v983 = vsel %vm982, %v980, -inf
    %984 = vmax.xlane.f32.xlu0 %v983
    %v985 = vpop.xlane.xlu0 %984
    %v987 = vlaneseq
    %v988 = vshrl.u32 %v987, 7
    %v989 = vsub.s32 0, %v988
    %v990 = vrot.slane %v985, %v989
    %v991 = vlaneseq
    %v992 = vshrl.u32 %v991, 7
    %v993 = vsub.s32 1, %v992
    %v994 = vrot.slane %v985, %v993
    %v995 = vlaneseq
    %v996 = vshrl.u32 %v995, 7
    %v997 = vsub.s32 2, %v996
    %v998 = vrot.slane %v985, %v997
    %v999 = vlaneseq
    %v1000 = vshrl.u32 %v999, 7
    %v1001 = vsub.s32 3, %v1000
    %v1002 = vrot.slane %v985, %v1001
    %v1003 = vlaneseq
    %v1004 = vshrl.u32 %v1003, 7
    %v1005 = vsub.s32 4, %v1004
    %v1006 = vrot.slane %v985, %v1005
    %v1007 = vlaneseq
    %v1008 = vshrl.u32 %v1007, 7
    %v1009 = vsub.s32 5, %v1008
    %v1010 = vrot.slane %v985, %v1009
    %v1011 = vlaneseq
    %v1012 = vshrl.u32 %v1011, 7
    %v1013 = vsub.s32 6, %v1012
    %v1014 = vrot.slane %v985, %v1013
    %v1015 = vlaneseq
    %v1016 = vshrl.u32 %v1015, 7
    %v1017 = vsub.s32 7, %v1016
    %v1018 = vrot.slane %v985, %v1017
    %v1027 = vsub.f32 %v910, %v990
    %v1028 = vsub.f32 %v912, %v994
    %v1029 = vsub.f32 %v914, %v998
    %v1030 = vsub.f32 %v916, %v1002
    %v1031 = vsub.f32 %v918, %v1006
    %v1032 = vsub.f32 %v920, %v1010
    %v1033 = vsub.f32 %v922, %v1014
    %v1034 = vsub.f32 %v924, %v1018
    %v1035 = vmul.f32 %v1027, 1.442695
    %v1036 = vpow.pop %v1035
    %v1037 = vmul.f32 %v1028, 1.442695
    %v1038 = vpow.pop %v1037
    %v1039 = vmul.f32 %v1029, 1.442695
    %v1040 = vpow.pop %v1039
    %v1041 = vmul.f32 %v1030, 1.442695
    %v1042 = vpow.pop %v1041
    %v1043 = vmul.f32 %v1031, 1.442695
    %v1044 = vpow.pop %v1043
    %v1045 = vmul.f32 %v1032, 1.442695
    %v1046 = vpow.pop %v1045
    %v1047 = vmul.f32 %v1033, 1.442695
    %v1048 = vpow.pop %v1047
    %v1049 = vmul.f32 %v1034, 1.442695
    %v1050 = vpow.pop %v1049
    %1059 = vset.pattern.permute.xlu0 0
    %1060 = vperm.xlu0 %1059, %v1036
    %v1061 = vpop.permute.xlu0 %1060
    %1062 = vset.pattern.permute.xlu0 0
    %1063 = vperm.xlu0 %1062, %v1038
    %v1064 = vpop.permute.xlu0 %1063
    %1065 = vset.pattern.permute.xlu0 0
    %1066 = vperm.xlu0 %1065, %v1040
    %v1067 = vpop.permute.xlu0 %1066
    %1068 = vset.pattern.permute.xlu0 0
    %1069 = vperm.xlu0 %1068, %v1042
    %v1070 = vpop.permute.xlu0 %1069
    %1071 = vset.pattern.permute.xlu0 0
    %1072 = vperm.xlu0 %1071, %v1044
    %v1073 = vpop.permute.xlu0 %1072
    %1074 = vset.pattern.permute.xlu0 0
    %1075 = vperm.xlu0 %1074, %v1046
    %v1076 = vpop.permute.xlu0 %1075
    %1077 = vset.pattern.permute.xlu0 0
    %1078 = vperm.xlu0 %1077, %v1048
    %v1079 = vpop.permute.xlu0 %1078
    %1080 = vset.pattern.permute.xlu0 0
    %1081 = vperm.xlu0 %1080, %v1050
    %v1082 = vpop.permute.xlu0 %1081
    %v1083 = vlaneseq
    %v1084 = vshrl.u32 %v1083, 7
    %v1085 = vsub.s32 %v934, %v1084
    %v1086 = vrot.slane %v1061, %v1085
    %v1087 = vlaneseq
    %v1088 = vshrl.u32 %v1087, 7
    %v1089 = vsub.s32 %v934, %v1088
    %v1090 = vrot.slane %v1064, %v1089
    %v1091 = vlaneseq
    %v1092 = vshrl.u32 %v1091, 7
    %v1093 = vsub.s32 %v934, %v1092
    %v1094 = vrot.slane %v1067, %v1093
    %v1095 = vlaneseq
    %v1096 = vshrl.u32 %v1095, 7
    %v1097 = vsub.s32 %v934, %v1096
    %v1098 = vrot.slane %v1070, %v1097
    %v1099 = vlaneseq
    %v1100 = vshrl.u32 %v1099, 7
    %v1101 = vsub.s32 %v934, %v1100
    %v1102 = vrot.slane %v1073, %v1101
    %v1103 = vlaneseq
    %v1104 = vshrl.u32 %v1103, 7
    %v1105 = vsub.s32 %v934, %v1104
    %v1106 = vrot.slane %v1076, %v1105
    %v1107 = vlaneseq
    %v1108 = vshrl.u32 %v1107, 7
    %v1109 = vsub.s32 %v934, %v1108
    %v1110 = vrot.slane %v1079, %v1109
    %v1111 = vlaneseq
    %v1112 = vshrl.u32 %v1111, 7
    %v1113 = vsub.s32 %v934, %v1112
    %v1114 = vrot.slane %v1082, %v1113
    %v1115 = vsel %vm967, %v1090, %v1086
    %v1116 = vsel %vm969, %v1094, %v1115
    %v1117 = vsel %vm971, %v1098, %v1116
    %v1118 = vsel %vm973, %v1102, %v1117
    %v1119 = vsel %vm975, %v1106, %v1118
    %v1120 = vsel %vm977, %v1110, %v1119
    %v1121 = vsel %vm979, %v1114, %v1120
    %v1123 = vsel %vm982, %v1121, 0.0
    %1124 = vadd.xlane.f32.xlu0 %v1123
    %v1125 = vpop.xlane.xlu0 %1124
    %v1126 = vrcp.pop %v1125
    %v1128 = vlaneseq
    %v1129 = vshrl.u32 %v1128, 7
    %v1130 = vsub.s32 0, %v1129
    %v1131 = vrot.slane %v1126, %v1130
    %v1132 = vlaneseq
    %v1133 = vshrl.u32 %v1132, 7
    %v1134 = vsub.s32 1, %v1133
    %v1135 = vrot.slane %v1126, %v1134
    %v1136 = vlaneseq
    %v1137 = vshrl.u32 %v1136, 7
    %v1138 = vsub.s32 2, %v1137
    %v1139 = vrot.slane %v1126, %v1138
    %v1140 = vlaneseq
    %v1141 = vshrl.u32 %v1140, 7
    %v1142 = vsub.s32 3, %v1141
    %v1143 = vrot.slane %v1126, %v1142
    %v1144 = vlaneseq
    %v1145 = vshrl.u32 %v1144, 7
    %v1146 = vsub.s32 4, %v1145
    %v1147 = vrot.slane %v1126, %v1146
    %v1148 = vlaneseq
    %v1149 = vshrl.u32 %v1148, 7
    %v1150 = vsub.s32 5, %v1149
    %v1151 = vrot.slane %v1126, %v1150
    %v1152 = vlaneseq
    %v1153 = vshrl.u32 %v1152, 7
    %v1154 = vsub.s32 6, %v1153
    %v1155 = vrot.slane %v1126, %v1154
    %v1156 = vlaneseq
    %v1157 = vshrl.u32 %v1156, 7
    %v1158 = vsub.s32 7, %v1157
    %v1159 = vrot.slane %v1126, %v1158
    %v1168 = vmul.f32 %v1036, %v1131
    %v1169 = vmul.f32 %v1038, %v1135
    %v1170 = vmul.f32 %v1040, %v1139
    %v1171 = vmul.f32 %v1042, %v1143
    %v1172 = vmul.f32 %v1044, %v1147
    %v1173 = vmul.f32 %v1046, %v1151
    %v1174 = vmul.f32 %v1048, %v1155
    %v1175 = vmul.f32 %v1050, %v1159
    %1177 = vset.pattern.permute.xlu0 0
    %1178 = vperm.xlu0 %1177, %v1168
    %v1179 = vpop.permute.xlu0 %1178
    %1182 = vset.pattern.permute.xlu0 0
    %1183 = vperm.xlu0 %1182, %v1169
    %v1184 = vpop.permute.xlu0 %1183
    %1187 = vset.pattern.permute.xlu0 0
    %1188 = vperm.xlu0 %1187, %v1170
    %v1189 = vpop.permute.xlu0 %1188
    %1192 = vset.pattern.permute.xlu0 0
    %1193 = vperm.xlu0 %1192, %v1171
    %v1194 = vpop.permute.xlu0 %1193
    %1197 = vset.pattern.permute.xlu0 0
    %1198 = vperm.xlu0 %1197, %v1172
    %v1199 = vpop.permute.xlu0 %1198
    %1202 = vset.pattern.permute.xlu0 0
    %1203 = vperm.xlu0 %1202, %v1173
    %v1204 = vpop.permute.xlu0 %1203
    %1207 = vset.pattern.permute.xlu0 0
    %1208 = vperm.xlu0 %1207, %v1174
    %v1209 = vpop.permute.xlu0 %1208
    %1212 = vset.pattern.permute.xlu0 0
    %1213 = vperm.xlu0 %1212, %v1175
    %v1214 = vpop.permute.xlu0 %1213
    %v1216 = vmul.f32 %v773, %v1179
    %v1217 = vmul.f32 %v778, %v1184
    %v1218 = vmul.f32 %v783, %v1189
    %v1219 = vmul.f32 %v788, %v1194
    %v1220 = vmul.f32 %v793, %v1199
    %v1221 = vmul.f32 %v798, %v1204
    %v1222 = vmul.f32 %v803, %v1209
    %v1223 = vmul.f32 %v808, %v1214
    %v1224 = vrot.slane %v1216, 4
    %v1225 = vadd.f32 %v1216, %v1224
    %v1226 = vrot.slane %v1225, 2
    %v1227 = vadd.f32 %v1225, %v1226
    %v1228 = vrot.slane %v1227, 1
    %v1229 = vadd.f32 %v1227, %v1228
    %v1230 = vrot.slane %v1217, 4
    %v1231 = vadd.f32 %v1217, %v1230
    %v1232 = vrot.slane %v1231, 2
    %v1233 = vadd.f32 %v1231, %v1232
    %v1234 = vrot.slane %v1233, 1
    %v1235 = vadd.f32 %v1233, %v1234
    %v1236 = vrot.slane %v1218, 4
    %v1237 = vadd.f32 %v1218, %v1236
    %v1238 = vrot.slane %v1237, 2
    %v1239 = vadd.f32 %v1237, %v1238
    %v1240 = vrot.slane %v1239, 1
    %v1241 = vadd.f32 %v1239, %v1240
    %v1242 = vrot.slane %v1219, 4
    %v1243 = vadd.f32 %v1219, %v1242
    %v1244 = vrot.slane %v1243, 2
    %v1245 = vadd.f32 %v1243, %v1244
    %v1246 = vrot.slane %v1245, 1
    %v1247 = vadd.f32 %v1245, %v1246
    %v1248 = vrot.slane %v1220, 4
    %v1249 = vadd.f32 %v1220, %v1248
    %v1250 = vrot.slane %v1249, 2
    %v1251 = vadd.f32 %v1249, %v1250
    %v1252 = vrot.slane %v1251, 1
    %v1253 = vadd.f32 %v1251, %v1252
    %v1254 = vrot.slane %v1221, 4
    %v1255 = vadd.f32 %v1221, %v1254
    %v1256 = vrot.slane %v1255, 2
    %v1257 = vadd.f32 %v1255, %v1256
    %v1258 = vrot.slane %v1257, 1
    %v1259 = vadd.f32 %v1257, %v1258
    %v1260 = vrot.slane %v1222, 4
    %v1261 = vadd.f32 %v1222, %v1260
    %v1262 = vrot.slane %v1261, 2
    %v1263 = vadd.f32 %v1261, %v1262
    %v1264 = vrot.slane %v1263, 1
    %v1265 = vadd.f32 %v1263, %v1264
    %v1266 = vrot.slane %v1223, 4
    %v1267 = vadd.f32 %v1223, %v1266
    %v1268 = vrot.slane %v1267, 2
    %v1269 = vadd.f32 %v1267, %v1268
    %v1270 = vrot.slane %v1269, 1
    %v1271 = vadd.f32 %v1269, %v1270
    %v1272 = vld [vmem:[%s10] sm:$0xff]
    %v1273 = vld [vmem:[%s10 + $0x8] sm:$0xff]
    %v1274 = vld [vmem:[%s10 + $0x10] sm:$0xff]
    %v1275 = vld [vmem:[%s10 + $0x18] sm:$0xff]
    %v1276 = vld [vmem:[%s10 + $0x20] sm:$0xff]
    %v1277 = vld [vmem:[%s10 + $0x28] sm:$0xff]
    %v1278 = vld [vmem:[%s10 + $0x30] sm:$0xff]
    %v1279 = vld [vmem:[%s10 + $0x38] sm:$0xff]
    %v1280 = vld [vmem:[%s10 + $0x40] sm:$0xff]
    %v1281 = vld [vmem:[%s10 + $0x48] sm:$0xff]
    %v1282 = vld [vmem:[%s10 + $0x50] sm:$0xff]
    %v1283 = vld [vmem:[%s10 + $0x58] sm:$0xff]
    %v1284 = vld [vmem:[%s10 + $0x60] sm:$0xff]
    %v1285 = vld [vmem:[%s10 + $0x68] sm:$0xff]
    %v1286 = vld [vmem:[%s10 + $0x70] sm:$0xff]
    %v1287 = vld [vmem:[%s10 + $0x78] sm:$0xff]
    %v1288 = vld [vmem:[#allocation16] sm:$0xff]
    %v1289 = vld [vmem:[#allocation16 + $0x8] sm:$0xff]
    %v1290 = vld [vmem:[#allocation16 + $0x10] sm:$0xff]
    %v1291 = vld [vmem:[#allocation16 + $0x18] sm:$0xff]
    %v1292 = vld [vmem:[#allocation16 + $0x20] sm:$0xff]
    %v1293 = vld [vmem:[#allocation16 + $0x28] sm:$0xff]
    %v1294 = vld [vmem:[#allocation16 + $0x30] sm:$0xff]
    %v1295 = vld [vmem:[#allocation16 + $0x38] sm:$0xff]
    %v1296 = vld [vmem:[#allocation16 + $0x40] sm:$0xff]
    %v1297 = vld [vmem:[#allocation16 + $0x48] sm:$0xff]
    %v1298 = vld [vmem:[#allocation16 + $0x50] sm:$0xff]
    %v1299 = vld [vmem:[#allocation16 + $0x58] sm:$0xff]
    %v1300 = vld [vmem:[#allocation16 + $0x60] sm:$0xff]
    %v1301 = vld [vmem:[#allocation16 + $0x68] sm:$0xff]
    %v1302 = vld [vmem:[#allocation16 + $0x70] sm:$0xff]
    %v1303 = vld [vmem:[#allocation16 + $0x78] sm:$0xff]
    %v1312 = vsel %vm967, %v1235, %v1229
    %v1313 = vsel %vm969, %v1241, %v1312
    %v1314 = vsel %vm971, %v1247, %v1313
    %v1315 = vsel %vm973, %v1253, %v1314
    %v1316 = vsel %vm975, %v1259, %v1315
    %v1317 = vsel %vm977, %v1265, %v1316
    %v1318 = vsel %vm979, %v1271, %v1317
    %1320 = vmatprep.subr.mxu0 0.0
    %1321 = vmatpush1.msra.mxu0 %v1288
    %1322 = vmatprep.subr.mxu0 0.0
    %1323 = vmatpush1.msra.mxu0 %v1289
    %1324 = vmatprep.subr.mxu0 0.0
    %1325 = vmatpush1.msra.mxu0 %v1290
    %1326 = vmatprep.subr.mxu0 0.0
    %1327 = vmatpush1.msra.mxu0 %v1291
    %1328 = vmatprep.subr.mxu0 0.0
    %1329 = vmatpush1.msra.mxu0 %v1292
    %1330 = vmatprep.subr.mxu0 0.0
    %1331 = vmatpush1.msra.mxu0 %v1293
    %1332 = vmatprep.subr.mxu0 0.0
    %1333 = vmatpush1.msra.mxu0 %v1294
    %1334 = vmatprep.subr.mxu0 0.0
    %1335 = vmatpush1.msra.mxu0 %v1295
    %1336 = vmatprep.subr.mxu0 0.0
    %1337 = vmatpush1.msra.mxu0 %v1296
    %1338 = vmatprep.subr.mxu0 0.0
    %1339 = vmatpush1.msra.mxu0 %v1297
    %1340 = vmatprep.subr.mxu0 0.0
    %1341 = vmatpush1.msra.mxu0 %v1298
    %1342 = vmatprep.subr.mxu0 0.0
    %1343 = vmatpush1.msra.mxu0 %v1299
    %1344 = vmatprep.subr.mxu0 0.0
    %1345 = vmatpush1.msra.mxu0 %v1300
    %1346 = vmatprep.subr.mxu0 0.0
    %1347 = vmatpush1.msra.mxu0 %v1301
    %1348 = vmatprep.subr.mxu0 0.0
    %1349 = vmatpush1.msra.mxu0 %v1302
    %1350 = vmatprep.subr.mxu0 0.0
    %1351 = vmatpush1.msra.mxu0 %v1303
    %1352 = vmatprep.subr.mxu0 0.0
    %1353 = vmatpush1.msra.mxu0 0.0
    %1354 = vmatprep.subr.mxu0 0.0
    %1355 = vmatpush1.msra.mxu0 0.0
    %1356 = vmatprep.subr.mxu0 0.0
    %1357 = vmatpush1.msra.mxu0 0.0
    %1358 = vmatprep.subr.mxu0 0.0
    %1359 = vmatpush1.msra.mxu0 0.0
    %1360 = vmatprep.subr.mxu0 0.0
    %1361 = vmatpush1.msra.mxu0 0.0
    %1362 = vmatprep.subr.mxu0 0.0
    %1363 = vmatpush1.msra.mxu0 0.0
    %1364 = vmatprep.subr.mxu0 0.0
    %1365 = vmatpush1.msra.mxu0 0.0
    %1366 = vmatprep.subr.mxu0 0.0
    %1367 = vmatpush1.msra.mxu0 0.0
    %1368 = vmatprep.subr.mxu0 0.0
    %1369 = vmatpush1.msra.mxu0 0.0
    %1370 = vmatprep.subr.mxu0 0.0
    %1371 = vmatpush1.msra.mxu0 0.0
    %1372 = vmatprep.subr.mxu0 0.0
    %1373 = vmatpush1.msra.mxu0 0.0
    %1374 = vmatprep.subr.mxu0 0.0
    %1375 = vmatpush1.msra.mxu0 0.0
    %1376 = vmatprep.subr.mxu0 0.0
    %1377 = vmatpush1.msra.mxu0 0.0
    %1378 = vmatprep.subr.mxu0 0.0
    %1379 = vmatpush1.msra.mxu0 0.0
    %1380 = vmatprep.subr.mxu0 0.0
    %1381 = vmatpush1.msra.mxu0 0.0
    %1382 = vmatprep.subr.mxu0 0.0
    %1383 = vmatpush1.msra.mxu0 0.0
    %1384 = vmatprep.mubr.f32.mxu0 0.0
    %1385 = vmatmul.mubr.f32.gmra.mrb[0].mxu0 %v1318
    %v1386 = vpop.f32.mrb[0].mxu0
    %v1387 = vadd.f32 0.0, %v1386
    %v1388 = vpop.f32.mrb[0].mxu0
    %1389 = vdwg.mxu0
    %1390 = vmatprep.subr.mxu0 0.0
    %1391 = vmatpush1.msra.mxu0 %v1272
    %1392 = vmatprep.subr.mxu0 0.0
    %1393 = vmatpush1.msra.mxu0 %v1273
    %1394 = vmatprep.subr.mxu0 0.0
    %1395 = vmatpush1.msra.mxu0 %v1274
    %1396 = vmatprep.subr.mxu0 0.0
    %1397 = vmatpush1.msra.mxu0 %v1275
    %1398 = vmatprep.subr.mxu0 0.0
    %1399 = vmatpush1.msra.mxu0 %v1276
    %1400 = vmatprep.subr.mxu0 0.0
    %1401 = vmatpush1.msra.mxu0 %v1277
    %1402 = vmatprep.subr.mxu0 0.0
    %1403 = vmatpush1.msra.mxu0 %v1278
    %1404 = vmatprep.subr.mxu0 0.0
    %1405 = vmatpush1.msra.mxu0 %v1279
    %1406 = vmatprep.subr.mxu0 0.0
    %1407 = vmatpush1.msra.mxu0 %v1280
    %1408 = vmatprep.subr.mxu0 0.0
    %1409 = vmatpush1.msra.mxu0 %v1281
    %1410 = vmatprep.subr.mxu0 0.0
    %1411 = vmatpush1.msra.mxu0 %v1282
    %1412 = vmatprep.subr.mxu0 0.0
    %1413 = vmatpush1.msra.mxu0 %v1283
    %1414 = vmatprep.subr.mxu0 0.0
    %1415 = vmatpush1.msra.mxu0 %v1284
    %1416 = vmatprep.subr.mxu0 0.0
    %1417 = vmatpush1.msra.mxu0 %v1285
    %1418 = vmatprep.subr.mxu0 0.0
    %1419 = vmatpush1.msra.mxu0 %v1286
    %1420 = vmatprep.subr.mxu0 0.0
    %1421 = vmatpush1.msra.mxu0 %v1287
    %1422 = vmatprep.subr.mxu0 0.0
    %1423 = vmatpush1.msra.mxu0 0.0
    %1424 = vmatprep.subr.mxu0 0.0
    %1425 = vmatpush1.msra.mxu0 0.0
    %1426 = vmatprep.subr.mxu0 0.0
    %1427 = vmatpush1.msra.mxu0 0.0
    %1428 = vmatprep.subr.mxu0 0.0
    %1429 = vmatpush1.msra.mxu0 0.0
    %1430 = vmatprep.subr.mxu0 0.0
    %1431 = vmatpush1.msra.mxu0 0.0
    %1432 = vmatprep.subr.mxu0 0.0
    %1433 = vmatpush1.msra.mxu0 0.0
    %1434 = vmatprep.subr.mxu0 0.0
    %1435 = vmatpush1.msra.mxu0 0.0
    %1436 = vmatprep.subr.mxu0 0.0
    %1437 = vmatpush1.msra.mxu0 0.0
    %1438 = vmatprep.subr.mxu0 0.0
    %1439 = vmatpush1.msra.mxu0 0.0
    %1440 = vmatprep.subr.mxu0 0.0
    %1441 = vmatpush1.msra.mxu0 0.0
    %1442 = vmatprep.subr.mxu0 0.0
    %1443 = vmatpush1.msra.mxu0 0.0
    %1444 = vmatprep.subr.mxu0 0.0
    %1445 = vmatpush1.msra.mxu0 0.0
    %1446 = vmatprep.subr.mxu0 0.0
    %1447 = vmatpush1.msra.mxu0 0.0
    %1448 = vmatprep.subr.mxu0 0.0
    %1449 = vmatpush1.msra.mxu0 0.0
    %1450 = vmatprep.subr.mxu0 0.0
    %1451 = vmatpush1.msra.mxu0 0.0
    %1452 = vmatprep.subr.mxu0 0.0
    %1453 = vmatpush1.msra.mxu0 0.0
    %1454 = vmatprep.mubr.f32.mxu0 0.0
    %1455 = vmatmul.mubr.f32.gmra.mrb[0].mxu0 %v276
    %v1456 = vpop.f32.mrb[0].mxu0
    %v1457 = vadd.f32 %v1387, %v1456
    %v1458 = vpop.f32.mrb[0].mxu0
    %1459 = vdwg.mxu0
    %v1460 = vld [vmem:[#allocation17] sm:$0x1]
    %v1462 = vlaneseq
    %v1463 = vshrl.u32 %v1462, 7
    %v1464 = vsub.s32 0, %v1463
    %v1465 = vrot.slane %v1460, %v1464
    %v1467 = vadd.f32 %v1457, %v1465
    %v1468 = vld [vmem:[%s13] sm:$0xff]
    %v1469 = vld [vmem:[%s13 + $0x8] sm:$0xff]
    %v1470 = vld [vmem:[%s13 + $0x10] sm:$0xff]
    %v1471 = vld [vmem:[%s13 + $0x18] sm:$0xff]
    %v1472 = vld [vmem:[%s13 + $0x20] sm:$0xff]
    %v1473 = vld [vmem:[%s13 + $0x28] sm:$0xff]
    %v1474 = vld [vmem:[%s13 + $0x30] sm:$0xff]
    %v1475 = vld [vmem:[%s13 + $0x38] sm:$0xff]
    %v1476 = vld [vmem:[%s13 + $0x40] sm:$0xff]
    %v1477 = vld [vmem:[%s13 + $0x48] sm:$0xff]
    %v1478 = vld [vmem:[%s13 + $0x50] sm:$0xff]
    %v1479 = vld [vmem:[%s13 + $0x58] sm:$0xff]
    %v1480 = vld [vmem:[%s13 + $0x60] sm:$0xff]
    %v1481 = vld [vmem:[%s13 + $0x68] sm:$0xff]
    %v1482 = vld [vmem:[%s13 + $0x70] sm:$0xff]
    %v1483 = vld [vmem:[%s13 + $0x78] sm:$0xff]
    %v1484 = vld [vmem:[#allocation19] sm:$0x1]
    %v1486 = vlaneseq
    %v1487 = vshrl.u32 %v1486, 7
    %v1488 = vsub.s32 0, %v1487
    %v1489 = vrot.slane %v1484, %v1488
    %1491 = vmatprep.subr.mxu0 0.0
    %1492 = vmatpush1.msra.mxu0 %v1468
    %1493 = vmatprep.subr.mxu0 0.0
    %1494 = vmatpush1.msra.mxu0 %v1469
    %1495 = vmatprep.subr.mxu0 0.0
    %1496 = vmatpush1.msra.mxu0 %v1470
    %1497 = vmatprep.subr.mxu0 0.0
    %1498 = vmatpush1.msra.mxu0 %v1471
    %1499 = vmatprep.subr.mxu0 0.0
    %1500 = vmatpush1.msra.mxu0 %v1472
    %1501 = vmatprep.subr.mxu0 0.0
    %1502 = vmatpush1.msra.mxu0 %v1473
    %1503 = vmatprep.subr.mxu0 0.0
    %1504 = vmatpush1.msra.mxu0 %v1474
    %1505 = vmatprep.subr.mxu0 0.0
    %1506 = vmatpush1.msra.mxu0 %v1475
    %1507 = vmatprep.subr.mxu0 0.0
    %1508 = vmatpush1.msra.mxu0 %v1476
    %1509 = vmatprep.subr.mxu0 0.0
    %1510 = vmatpush1.msra.mxu0 %v1477
    %1511 = vmatprep.subr.mxu0 0.0
    %1512 = vmatpush1.msra.mxu0 %v1478
    %1513 = vmatprep.subr.mxu0 0.0
    %1514 = vmatpush1.msra.mxu0 %v1479
    %1515 = vmatprep.subr.mxu0 0.0
    %1516 = vmatpush1.msra.mxu0 %v1480
    %1517 = vmatprep.subr.mxu0 0.0
    %1518 = vmatpush1.msra.mxu0 %v1481
    %1519 = vmatprep.subr.mxu0 0.0
    %1520 = vmatpush1.msra.mxu0 %v1482
    %1521 = vmatprep.subr.mxu0 0.0
    %1522 = vmatpush1.msra.mxu0 %v1483
    %1523 = vmatprep.subr.mxu0 0.0
    %1524 = vmatpush1.msra.mxu0 0.0
    %1525 = vmatprep.subr.mxu0 0.0
    %1526 = vmatpush1.msra.mxu0 0.0
    %1527 = vmatprep.subr.mxu0 0.0
    %1528 = vmatpush1.msra.mxu0 0.0
    %1529 = vmatprep.subr.mxu0 0.0
    %1530 = vmatpush1.msra.mxu0 0.0
    %1531 = vmatprep.subr.mxu0 0.0
    %1532 = vmatpush1.msra.mxu0 0.0
    %1533 = vmatprep.subr.mxu0 0.0
    %1534 = vmatpush1.msra.mxu0 0.0
    %1535 = vmatprep.subr.mxu0 0.0
    %1536 = vmatpush1.msra.mxu0 0.0
    %1537 = vmatprep.subr.mxu0 0.0
    %1538 = vmatpush1.msra.mxu0 0.0
    %1539 = vmatprep.subr.mxu0 0.0
    %1540 = vmatpush1.msra.mxu0 0.0
    %1541 = vmatprep.subr.mxu0 0.0
    %1542 = vmatpush1.msra.mxu0 0.0
    %1543 = vmatprep.subr.mxu0 0.0
    %1544 = vmatpush1.msra.mxu0 0.0
    %1545 = vmatprep.subr.mxu0 0.0
    %1546 = vmatpush1.msra.mxu0 0.0
    %1547 = vmatprep.subr.mxu0 0.0
    %1548 = vmatpush1.msra.mxu0 0.0
    %1549 = vmatprep.subr.mxu0 0.0
    %1550 = vmatpush1.msra.mxu0 0.0
    %1551 = vmatprep.subr.mxu0 0.0
    %1552 = vmatpush1.msra.mxu0 0.0
    %1553 = vmatprep.subr.mxu0 0.0
    %1554 = vmatpush1.msra.mxu0 0.0
    %1555 = vmatprep.mubr.f32.mxu0 0.0
    %1556 = vmatmul.mubr.f32.gmra.mrb[0].mxu0 %v1467
    %v1557 = vpop.f32.mrb[0].mxu0
    %v1558 = vadd.f32 %v1489, %v1557
    %v1559 = vpop.f32.mrb[0].mxu0
    %1560 = vdwg.mxu0
    %v1561 = vmax.f32 %v1558, 0.0
    %v1562 = vld [vmem:[%s15] sm:$0xff]
    %v1563 = vld [vmem:[%s15 + $0x8] sm:$0xff]
    %v1564 = vld [vmem:[%s15 + $0x10] sm:$0xff]
    %v1565 = vld [vmem:[%s15 + $0x18] sm:$0xff]
    %v1566 = vld [vmem:[%s15 + $0x20] sm:$0xff]
    %v1567 = vld [vmem:[%s15 + $0x28] sm:$0xff]
    %v1568 = vld [vmem:[%s15 + $0x30] sm:$0xff]
    %v1569 = vld [vmem:[%s15 + $0x38] sm:$0xff]
    %v1570 = vld [vmem:[%s16] sm:$0x1]
    %v1572 = vlaneseq
    %v1573 = vshrl.u32 %v1572, 7
    %v1574 = vsub.s32 0, %v1573
    %v1575 = vrot.slane %v1570, %v1574
    %v1578 = vsel %vm450, %v1561, 0
    %1580 = vmatprep.subr.mxu0 0.0
    %1581 = vmatpush1.msra.mxu0 %v1562
    %1582 = vmatprep.subr.mxu0 0.0
    %1583 = vmatpush1.msra.mxu0 %v1563
    %1584 = vmatprep.subr.mxu0 0.0
    %1585 = vmatpush1.msra.mxu0 %v1564
    %1586 = vmatprep.subr.mxu0 0.0
    %1587 = vmatpush1.msra.mxu0 %v1565
    %1588 = vmatprep.subr.mxu0 0.0
    %1589 = vmatpush1.msra.mxu0 %v1566
    %1590 = vmatprep.subr.mxu0 0.0
    %1591 = vmatpush1.msra.mxu0 %v1567
    %1592 = vmatprep.subr.mxu0 0.0
    %1593 = vmatpush1.msra.mxu0 %v1568
    %1594 = vmatprep.subr.mxu0 0.0
    %1595 = vmatpush1.msra.mxu0 %v1569
    %1596 = vmatprep.subr.mxu0 0.0
    %1597 = vmatpush1.msra.mxu0 0.0
    %1598 = vmatprep.subr.mxu0 0.0
    %1599 = vmatpush1.msra.mxu0 0.0
    %1600 = vmatprep.subr.mxu0 0.0
    %1601 = vmatpush1.msra.mxu0 0.0
    %1602 = vmatprep.subr.mxu0 0.0
    %1603 = vmatpush1.msra.mxu0 0.0
    %1604 = vmatprep.subr.mxu0 0.0
    %1605 = vmatpush1.msra.mxu0 0.0
    %1606 = vmatprep.subr.mxu0 0.0
    %1607 = vmatpush1.msra.mxu0 0.0
    %1608 = vmatprep.subr.mxu0 0.0
    %1609 = vmatpush1.msra.mxu0 0.0
    %1610 = vmatprep.subr.mxu0 0.0
    %1611 = vmatpush1.msra.mxu0 0.0
    %1612 = vmatprep.subr.mxu0 0.0
    %1613 = vmatpush1.msra.mxu0 0.0
    %1614 = vmatprep.subr.mxu0 0.0
    %1615 = vmatpush1.msra.mxu0 0.0
    %1616 = vmatprep.subr.mxu0 0.0
    %1617 = vmatpush1.msra.mxu0 0.0
    %1618 = vmatprep.subr.mxu0 0.0
    %1619 = vmatpush1.msra.mxu0 0.0
    %1620 = vmatprep.subr.mxu0 0.0
    %1621 = vmatpush1.msra.mxu0 0.0
    %1622 = vmatprep.subr.mxu0 0.0
    %1623 = vmatpush1.msra.mxu0 0.0
    %1624 = vmatprep.subr.mxu0 0.0
    %1625 = vmatpush1.msra.mxu0 0.0
    %1626 = vmatprep.subr.mxu0 0.0
    %1627 = vmatpush1.msra.mxu0 0.0
    %1628 = vmatprep.subr.mxu0 0.0
    %1629 = vmatpush1.msra.mxu0 0.0
    %1630 = vmatprep.subr.mxu0 0.0
    %1631 = vmatpush1.msra.mxu0 0.0
    %1632 = vmatprep.subr.mxu0 0.0
    %1633 = vmatpush1.msra.mxu0 0.0
    %1634 = vmatprep.subr.mxu0 0.0
    %1635 = vmatpush1.msra.mxu0 0.0
    %1636 = vmatprep.subr.mxu0 0.0
    %1637 = vmatpush1.msra.mxu0 0.0
    %1638 = vmatprep.subr.mxu0 0.0
    %1639 = vmatpush1.msra.mxu0 0.0
    %1640 = vmatprep.subr.mxu0 0.0
    %1641 = vmatpush1.msra.mxu0 0.0
    %1642 = vmatprep.subr.mxu0 0.0
    %1643 = vmatpush1.msra.mxu0 0.0
    %1644 = vmatprep.mubr.f32.mxu0 0.0
    %1645 = vmatmul.mubr.f32.gmra.mrb[0].mxu0 %v1578
    %v1646 = vpop.f32.mrb[0].mxu0
    %v1647 = vadd.f32 %v1575, %v1646
    %v1648 = vpop.f32.mrb[0].mxu0
    %1649 = vdwg.mxu0
    %v1650 = vtanh.pop %v1647
    %1651 = vst [vmem:[#allocation20] sm:$0xff] %v1650
    // Predicated region
    $region114: #{tpu_custom_call.1} parent=1 // pred_check
      _
    $region115: #{tpu_custom_call.1} parent=1 // pred_check_branch
      %1653 = sbr.rel (0) target = $region117
    $region116: #{tpu_custom_call.1} parent=1 // pred_region
      %s1655 = ssub.s32 128, 128
      %1656 = vsyncadd [#allocation4], %s1655
      %s1658 = sshll.u32 [#allocation20], 4
      %s1659 = int_to_ptr.vmem [resolvable:$true] %s1658
      %1661 = dma.vmem_to_hbm [thread:$0]  %s1659, 128, %s17, [#allocation4]
    $region117: #{tpu_custom_call.1} parent=1 // pred_fallthru
      _
    // Predicated region
    $region118: #{tpu_custom_call.1} parent=1 // pred_check
      _
    $region119: #{tpu_custom_call.1} parent=1 // pred_check_branch
      %1663 = sbr.rel (0) target = $region121
    $region120: #{tpu_custom_call.1} parent=1 // pred_region
      %1664 = dma.done [#allocation4], 128
    $region121: #{tpu_custom_call.1} parent=1 // pred_fallthru
      _
    %1665 = vsyncpa [#allocation3], 1
    %1666 = vsyncpa [#allocation6], 1
    %1667 = vsyncpa [#allocation9], 1
    %1668 = vsyncpa [#allocation12], 1
    %1669 = vsyncpa [#allocation15], 1
    %1670 = vsyncpa [#allocation18], 1
    %1671 = vsyncpa [#allocation4], 1

</llo_original>
